<compile_context>
chip_gen: v5e
topology: v5e:2x2
jax: 0.10.0
libtpu: 0.0.40
codegen_flags: <defaults>
</compile_context>

<pallas_src>
import jax
import jax.numpy as jnp
from jax.experimental import pallas as pl
from jax.experimental.pallas import tpu as pltpu


# ---------------------------------------------------------------------------
# Kernel: whole forward pass for one batch tile (here: the whole batch).
# ---------------------------------------------------------------------------
def emb_reg_sigmoid_kernel(patches_ref, avg_ref, wc_ref, bc_ref,
                           w1_ref, b1_ref, w2_ref, b2_ref,
                           w3_ref, b3_ref, out_ref):
    f32 = jnp.float32
    bf16 = jnp.bfloat16

    def leaky_relu(v):                      # torch LeakyReLU default slope = 0.01
        return jnp.where(v >= 0.0, v, 0.01 * v)

    # --- patch_embeddings: Conv2d(kernel=stride=patch) == im2col matmul -----
    # patches: (Bb*n_patches, K) bf16, wc: (K, hidden) bf16 -> f32 accumulate.
    conv = jnp.dot(patches_ref[...], wc_ref[...],
                   preferred_element_type=f32)                    # (Bb*P, hidden)

    # --- AdaptiveAvgPool2d((1,1)) + flatten: block-diagonal averaging matmul -
    # bf16 operands -> f32 accumulate; conv bias is constant across patches, so
    # adding it once after the pool is equivalent and cheaper.
    emb = jnp.dot(avg_ref[...], conv.astype(bf16),
                  preferred_element_type=f32) + bc_ref[...]       # (Bb, hidden)
    # Dropout: identity in eval mode.

    # --- MLP head: bf16 MXU matmuls, f32 accumulation / activations ---------
    h = jnp.dot(emb.astype(bf16), w1_ref[...],
                preferred_element_type=f32) + b1_ref[...]          # (Bb, D1)
    h = leaky_relu(h)
    h = jnp.dot(h.astype(bf16), w2_ref[...],
                preferred_element_type=f32) + b2_ref[...]          # (Bb, D2)
    h = leaky_relu(h)
    # fc3 has out_features=1: VPU mul + XLU lane-reduce instead of an N=1 matmul.
    h = jnp.sum(h * w3_ref[...], axis=-1, keepdims=True) + b3_ref[...]   # (Bb, 1)

    # --- sigmoid * 4 via EUP tanh: 4*sigmoid(x) = 2*(tanh(x/2) + 1) ----------
    out_ref[...] = 2.0 * (jnp.tanh(0.5 * h) + 1.0)


# ---------------------------------------------------------------------------
# Wrapper: layout plumbing (im2col, weight transpose, bf16 cast) + pallas_call.
# ---------------------------------------------------------------------------
def embedding_regression_sigmoid(x, params, patch):
    B, C, H, W = x.shape
    GH, GW = H // patch, W // patch
    n_patches = GH * GW
    K = C * patch * patch
    hidden = params["wc"].shape[0]
    D1 = params["w1"].shape[1]
    D2 = params["w2"].shape[1]
    bf16 = jnp.bfloat16

    # im2col of the non-overlapping patch grid; column order (c, kh, kw) matches
    # torch's Conv2d weight flattening.  Pure reshape/transpose -> wrapper side.
    patches = (x.reshape(B, C, GH, patch, GW, patch)
                 .transpose(0, 2, 4, 1, 3, 5)
                 .reshape(B * n_patches, K)).astype(bf16)

    wc_mat = params["wc"].reshape(hidden, K).T.astype(bf16)        # (K, hidden)
    bc = params["bc"].reshape(1, hidden).astype(jnp.float32)

    Bb = B                                  # whole (tiny) batch per grid step
    n_tiles = pl.cdiv(B, Bb)

    # Block-diagonal averaging matrix implementing AdaptiveAvgPool2d((1,1)).
    # (1/n_patches is exact in bf16 for power-of-two patch grids.)
    avg = jnp.kron(jnp.eye(Bb, dtype=jnp.float32),
                   jnp.full((1, n_patches), 1.0 / n_patches, jnp.float32)
                   ).astype(bf16)

    w1 = params["w1"].astype(bf16)
    b1 = params["b1"].reshape(1, D1).astype(jnp.float32)
    w2 = params["w2"].astype(bf16)
    b2 = params["b2"].reshape(1, D2).astype(jnp.float32)
    w3 = params["w3"].reshape(1, D2).astype(jnp.float32)           # fc3 row vector
    b3 = params["b3"].reshape(1, 1).astype(jnp.float32)

    in_specs = [
        pl.BlockSpec((Bb * n_patches, K), lambda i: (i, 0)),       # patches (per tile)
        pl.BlockSpec((Bb, Bb * n_patches), lambda i: (0, 0)),      # avg-pool matrix
        pl.BlockSpec((K, hidden), lambda i: (0, 0)),               # conv weight
        pl.BlockSpec((1, hidden), lambda i: (0, 0)),               # conv bias
        pl.BlockSpec((hidden, D1), lambda i: (0, 0)),              # fc1
        pl.BlockSpec((1, D1), lambda i: (0, 0)),
        pl.BlockSpec((D1, D2), lambda i: (0, 0)),                  # fc2
        pl.BlockSpec((1, D2), lambda i: (0, 0)),
        pl.BlockSpec((1, D2), lambda i: (0, 0)),                   # fc3 (row form)
        pl.BlockSpec((1, 1), lambda i: (0, 0)),
    ]
    out_specs = pl.BlockSpec((Bb, 1), lambda i: (i, 0))

    return pl.pallas_call(
        emb_reg_sigmoid_kernel,
        out_shape=jax.ShapeDtypeStruct((B, 1), jnp.float32),
        grid_spec=pltpu.PrefetchScalarGridSpec(
            num_scalar_prefetch=0,
            grid=(n_tiles,),
            in_specs=in_specs,
            out_specs=out_specs),
        compiler_params=pltpu.CompilerParams(
            dimension_semantics=("parallel",),
            # explicit budget; safe on v5e/v6e (128 MiB) and v7x (64 MiB physical)
            vmem_limit_bytes=32 * 1024 * 1024),
    )(patches, avg, wc_mat, bc, w1, b1, w2, b2, w3, b3)


# ---------------------------------------------------------------------------
# Pure-JAX reference mirroring the PyTorch forward (Conv2d via lax.conv),
# with the same bf16 matmul-operand casts the kernel uses.
# ---------------------------------------------------------------------------
def reference(x, params, patch):
    bf16 = jnp.bfloat16
    conv = jax.lax.conv_general_dilated(
        x.astype(bf16), params["wc"].astype(bf16),
        window_strides=(patch, patch), padding="VALID",
        dimension_numbers=("NCHW", "OIHW", "NCHW"),
        preferred_element_type=jnp.float32)
    conv = conv + params["bc"].reshape(1, -1, 1, 1)
    emb = jnp.mean(conv, axis=(2, 3))                 # AdaptiveAvgPool2d((1,1)) + view

    def leaky(v):
        return jnp.where(v >= 0.0, v, 0.01 * v)

    h = jnp.dot(emb.astype(bf16), params["w1"].astype(bf16),
                preferred_element_type=jnp.float32) + params["b1"]
    h = leaky(h)
    h = jnp.dot(h.astype(bf16), params["w2"].astype(bf16),
                preferred_element_type=jnp.float32) + params["b2"]
    h = leaky(h)
    h = h @ params["w3"] + params["b3"]               # (B, 1), f32
    return jax.nn.sigmoid(h) * 4.0


# ---------------------------------------------------------------------------
if __name__ == "__main__":
    # Small shapes consistent with the forward: fc1's in_features is tied to
    # config.hidden_size, so hidden=128 here (576*768 in production).
    B, C, IMG, PATCH = 2, 1, 16, 4
    HIDDEN, D1, D2 = 128, 1024, 256

    key = jax.random.PRNGKey(0)
    ks = jax.random.split(key, 9)

    def nrm(k, shape, std):
        return std * jax.random.normal(k, shape, jnp.float32)

    params = {
        "wc": nrm(ks[0], (HIDDEN, C, PATCH, PATCH), 0.10),   # Conv2d OIHW
        "bc": nrm(ks[1], (HIDDEN,), 0.02),
        "w1": nrm(ks[2], (HIDDEN, D1), 0.05),                # stored (in, out)
        "b1": nrm(ks[3], (D1,), 0.02),
        "w2": nrm(ks[4], (D1, D2), 0.05),
        "b2": nrm(ks[5], (D2,), 0.02),
        "w3": nrm(ks[6], (D2, 1), 0.05),
        "b3": nrm(ks[7], (1,), 0.02),
    }
    x = jax.random.normal(ks[8], (B, C, IMG, IMG), jnp.float32)

    out = embedding_regression_sigmoid(x, params, PATCH)
    out = jax.block_until_ready(out)

    ref = reference(x, params, PATCH)
    assert out.shape == (B, 1), f"bad output shape {out.shape}"
    assert jnp.all(jnp.isfinite(out)), "non-finite output"
    # bf16 matmul operands + differing f32 accumulation order between the kernel
    # (im2col matmul + bf16 pooling matmul) and the lax.conv reference
    # -> tolerance-based check.
    assert jnp.allclose(out, ref, atol=3e-3, rtol=3e-3), (
        f"output mismatch: max abs diff {jnp.max(jnp.abs(out - ref))}")

    print("KERNEL_OK")
</pallas_src>

<mosaic_0001>
module attributes {stable_mosaic.version = 11 : i64} {
  func.func @emb_reg_sigmoid_kernel(%arg0: i32, %arg1: memref<32x16xbf16, #tpu.memory_space<vmem>>, %arg2: memref<2x32xbf16, #tpu.memory_space<vmem>>, %arg3: memref<16x128xbf16, #tpu.memory_space<vmem>>, %arg4: memref<1x128xf32, #tpu.memory_space<vmem>>, %arg5: memref<128x1024xbf16, #tpu.memory_space<vmem>>, %arg6: memref<1x1024xf32, #tpu.memory_space<vmem>>, %arg7: memref<1024x256xbf16, #tpu.memory_space<vmem>>, %arg8: memref<1x256xf32, #tpu.memory_space<vmem>>, %arg9: memref<1x256xf32, #tpu.memory_space<vmem>>, %arg10: memref<1x1xf32, #tpu.memory_space<vmem>>, %arg11: memref<2x1xf32, #tpu.memory_space<vmem>>) attributes {dimension_semantics = [#tpu.dimension_semantics<parallel>], iteration_bounds = array<i64: 1>, scalar_prefetch = 0 : i64, scratch_operands = 0 : i64, tpu.core_type = #tpu.core_type<tc>, window_params = [{transform_indices = @transform_0, window_bounds = array<i64: 32, 16>}, {pipeline_mode = #tpu.pipeline_mode<synchronous>, transform_indices = @transform_1, window_bounds = array<i64: 2, 32>}, {pipeline_mode = #tpu.pipeline_mode<synchronous>, transform_indices = @transform_2, window_bounds = array<i64: 16, 128>}, {pipeline_mode = #tpu.pipeline_mode<synchronous>, transform_indices = @transform_3, window_bounds = array<i64: 1, 128>}, {pipeline_mode = #tpu.pipeline_mode<synchronous>, transform_indices = @transform_4, window_bounds = array<i64: 128, 1024>}, {pipeline_mode = #tpu.pipeline_mode<synchronous>, transform_indices = @transform_5, window_bounds = array<i64: 1, 1024>}, {pipeline_mode = #tpu.pipeline_mode<synchronous>, transform_indices = @transform_6, window_bounds = array<i64: 1024, 256>}, {pipeline_mode = #tpu.pipeline_mode<synchronous>, transform_indices = @transform_7, window_bounds = array<i64: 1, 256>}, {pipeline_mode = #tpu.pipeline_mode<synchronous>, transform_indices = @transform_8, window_bounds = array<i64: 1, 256>}, {pipeline_mode = #tpu.pipeline_mode<synchronous>, transform_indices = @transform_9, window_bounds = array<i64: 1, 1>}, {transform_indices = @transform_10, window_bounds = array<i64: 2, 1>}]} {
    %c0 = arith.constant 0 : index
    %c0_0 = arith.constant 0 : index
    %0 = vector.load %arg1[%c0, %c0_0] : memref<32x16xbf16, #tpu.memory_space<vmem>>, vector<32x16xbf16>
    %c0_1 = arith.constant 0 : index
    %c0_2 = arith.constant 0 : index
    %1 = vector.load %arg3[%c0_1, %c0_2] : memref<16x128xbf16, #tpu.memory_space<vmem>>, vector<16x128xbf16>
    %cst = arith.constant dense<0.000000e+00> : vector<32x128xf32>
    %2 = tpu.matmul %0, %1, %cst {dimension_numbers = #tpu.dot_dimension_numbers<[1], [0], [0], [1], [0, 0, 1, 1], [], []>} : vector<32x16xbf16>, vector<16x128xbf16>, vector<32x128xf32> -> vector<32x128xf32>
    %c0_3 = arith.constant 0 : index
    %c0_4 = arith.constant 0 : index
    %3 = vector.load %arg2[%c0_3, %c0_4] : memref<2x32xbf16, #tpu.memory_space<vmem>>, vector<2x32xbf16>
    %4 = arith.truncf %2 : vector<32x128xf32> to vector<32x128xbf16>
    %cst_5 = arith.constant dense<0.000000e+00> : vector<2x128xf32>
    %5 = tpu.matmul %3, %4, %cst_5 {dimension_numbers = #tpu.dot_dimension_numbers<[1], [0], [0], [1], [0, 0, 1, 1], [], []>} : vector<2x32xbf16>, vector<32x128xbf16>, vector<2x128xf32> -> vector<2x128xf32>
    %c0_6 = arith.constant 0 : index
    %c0_7 = arith.constant 0 : index
    %6 = vector.load %arg4[%c0_6, %c0_7] : memref<1x128xf32, #tpu.memory_space<vmem>>, vector<1x128xf32>
    %7 = vector.broadcast %6 : vector<1x128xf32> to vector<2x128xf32>
    %8 = arith.addf %5, %7 : vector<2x128xf32>
    %9 = arith.truncf %8 : vector<2x128xf32> to vector<2x128xbf16>
    %c0_8 = arith.constant 0 : index
    %c0_9 = arith.constant 0 : index
    %10 = vector.load %arg5[%c0_8, %c0_9] : memref<128x1024xbf16, #tpu.memory_space<vmem>>, vector<128x1024xbf16>
    %cst_10 = arith.constant dense<0.000000e+00> : vector<2x1024xf32>
    %11 = tpu.matmul %9, %10, %cst_10 {dimension_numbers = #tpu.dot_dimension_numbers<[1], [0], [0], [1], [0, 0, 1, 1], [], []>} : vector<2x128xbf16>, vector<128x1024xbf16>, vector<2x1024xf32> -> vector<2x1024xf32>
    %c0_11 = arith.constant 0 : index
    %c0_12 = arith.constant 0 : index
    %12 = vector.load %arg6[%c0_11, %c0_12] : memref<1x1024xf32, #tpu.memory_space<vmem>>, vector<1x1024xf32>
    %13 = vector.broadcast %12 : vector<1x1024xf32> to vector<2x1024xf32>
    %14 = arith.addf %11, %13 : vector<2x1024xf32>
    %cst_13 = arith.constant 0.000000e+00 : f32
    %15 = vector.broadcast %cst_13 : f32 to vector<2x1024xf32>
    %16 = arith.cmpf oge, %14, %15 : vector<2x1024xf32>
    %cst_14 = arith.constant 0.00999999977 : f32
    %17 = vector.broadcast %cst_14 : f32 to vector<2x1024xf32>
    %18 = arith.mulf %17, %14 : vector<2x1024xf32>
    %19 = arith.select %16, %14, %18 : vector<2x1024xi1>, vector<2x1024xf32>
    %20 = arith.truncf %19 : vector<2x1024xf32> to vector<2x1024xbf16>
    %c0_15 = arith.constant 0 : index
    %c0_16 = arith.constant 0 : index
    %21 = vector.load %arg7[%c0_15, %c0_16] : memref<1024x256xbf16, #tpu.memory_space<vmem>>, vector<1024x256xbf16>
    %cst_17 = arith.constant dense<0.000000e+00> : vector<2x256xf32>
    %22 = tpu.matmul %20, %21, %cst_17 {dimension_numbers = #tpu.dot_dimension_numbers<[1], [0], [0], [1], [0, 0, 1, 1], [], []>} : vector<2x1024xbf16>, vector<1024x256xbf16>, vector<2x256xf32> -> vector<2x256xf32>
    %c0_18 = arith.constant 0 : index
    %c0_19 = arith.constant 0 : index
    %23 = vector.load %arg8[%c0_18, %c0_19] : memref<1x256xf32, #tpu.memory_space<vmem>>, vector<1x256xf32>
    %24 = vector.broadcast %23 : vector<1x256xf32> to vector<2x256xf32>
    %25 = arith.addf %22, %24 : vector<2x256xf32>
    %cst_20 = arith.constant 0.000000e+00 : f32
    %26 = vector.broadcast %cst_20 : f32 to vector<2x256xf32>
    %27 = arith.cmpf oge, %25, %26 : vector<2x256xf32>
    %cst_21 = arith.constant 0.00999999977 : f32
    %28 = vector.broadcast %cst_21 : f32 to vector<2x256xf32>
    %29 = arith.mulf %28, %25 : vector<2x256xf32>
    %30 = arith.select %27, %25, %29 : vector<2x256xi1>, vector<2x256xf32>
    %c0_22 = arith.constant 0 : index
    %c0_23 = arith.constant 0 : index
    %31 = vector.load %arg9[%c0_22, %c0_23] : memref<1x256xf32, #tpu.memory_space<vmem>>, vector<1x256xf32>
    %32 = vector.broadcast %31 : vector<1x256xf32> to vector<2x256xf32>
    %33 = arith.mulf %30, %32 : vector<2x256xf32>
    %cst_24 = arith.constant dense<0.000000e+00> : vector<2xf32>
    %34 = vector.multi_reduction <add>, %33, %cst_24 [1] : vector<2x256xf32> to vector<2xf32>
    %35 = vector.shape_cast %34 : vector<2xf32> to vector<2x1xf32>
    %c0_25 = arith.constant 0 : index
    %c0_26 = arith.constant 0 : index
    %36 = vector.load %arg10[%c0_25, %c0_26] : memref<1x1xf32, #tpu.memory_space<vmem>>, vector<1x1xf32>
    %37 = vector.broadcast %36 : vector<1x1xf32> to vector<2x1xf32>
    %38 = arith.addf %35, %37 : vector<2x1xf32>
    %cst_27 = arith.constant 5.000000e-01 : f32
    %39 = vector.broadcast %cst_27 : f32 to vector<2x1xf32>
    %40 = arith.mulf %39, %38 : vector<2x1xf32>
    %41 = math.tanh %40 : vector<2x1xf32>
    %cst_28 = arith.constant 1.000000e+00 : f32
    %42 = vector.broadcast %cst_28 : f32 to vector<2x1xf32>
    %43 = arith.addf %41, %42 : vector<2x1xf32>
    %cst_29 = arith.constant 2.000000e+00 : f32
    %44 = vector.broadcast %cst_29 : f32 to vector<2x1xf32>
    %45 = arith.mulf %44, %43 : vector<2x1xf32>
    %c0_30 = arith.constant 0 : index
    %c0_31 = arith.constant 0 : index
    %46 = vector.load %arg11[%c0_30, %c0_31] : memref<2x1xf32, #tpu.memory_space<vmem>>, vector<2x1xf32>
    tpu.vector_store %arg11[%c0_30, %c0_31], %45 {strides = array<i32>} : memref<2x1xf32, #tpu.memory_space<vmem>>, vector<2x1xf32>,
    return
  }
  func.func @transform_0(%arg0: i32) -> (i32, i32) {
    %c0_i32 = arith.constant 0 : i32
    %c0_i32_0 = arith.constant 0 : i32
    return %arg0, %c0_i32 : i32, i32
  }
  func.func @transform_1(%arg0: i32) -> (i32, i32) {
    %c0_i32 = arith.constant 0 : i32
    %c0_i32_0 = arith.constant 0 : i32
    %c0_i32_1 = arith.constant 0 : i32
    return %c0_i32, %c0_i32_0 : i32, i32
  }
  func.func @transform_2(%arg0: i32) -> (i32, i32) {
    %c0_i32 = arith.constant 0 : i32
    %c0_i32_0 = arith.constant 0 : i32
    %c0_i32_1 = arith.constant 0 : i32
    return %c0_i32, %c0_i32_0 : i32, i32
  }
  func.func @transform_3(%arg0: i32) -> (i32, i32) {
    %c0_i32 = arith.constant 0 : i32
    %c0_i32_0 = arith.constant 0 : i32
    %c0_i32_1 = arith.constant 0 : i32
    return %c0_i32, %c0_i32_0 : i32, i32
  }
  func.func @transform_4(%arg0: i32) -> (i32, i32) {
    %c0_i32 = arith.constant 0 : i32
    %c0_i32_0 = arith.constant 0 : i32
    %c0_i32_1 = arith.constant 0 : i32
    return %c0_i32, %c0_i32_0 : i32, i32
  }
  func.func @transform_5(%arg0: i32) -> (i32, i32) {
    %c0_i32 = arith.constant 0 : i32
    %c0_i32_0 = arith.constant 0 : i32
    %c0_i32_1 = arith.constant 0 : i32
    return %c0_i32, %c0_i32_0 : i32, i32
  }
  func.func @transform_6(%arg0: i32) -> (i32, i32) {
    %c0_i32 = arith.constant 0 : i32
    %c0_i32_0 = arith.constant 0 : i32
    %c0_i32_1 = arith.constant 0 : i32
    return %c0_i32, %c0_i32_0 : i32, i32
  }
  func.func @transform_7(%arg0: i32) -> (i32, i32) {
    %c0_i32 = arith.constant 0 : i32
    %c0_i32_0 = arith.constant 0 : i32
    %c0_i32_1 = arith.constant 0 : i32
    return %c0_i32, %c0_i32_0 : i32, i32
  }
  func.func @transform_8(%arg0: i32) -> (i32, i32) {
    %c0_i32 = arith.constant 0 : i32
    %c0_i32_0 = arith.constant 0 : i32
    %c0_i32_1 = arith.constant 0 : i32
    return %c0_i32, %c0_i32_0 : i32, i32
  }
  func.func @transform_9(%arg0: i32) -> (i32, i32) {
    %c0_i32 = arith.constant 0 : i32
    %c0_i32_0 = arith.constant 0 : i32
    %c0_i32_1 = arith.constant 0 : i32
    return %c0_i32, %c0_i32_0 : i32, i32
  }
  func.func @transform_10(%arg0: i32) -> (i32, i32) {
    %c0_i32 = arith.constant 0 : i32
    %c0_i32_0 = arith.constant 0 : i32
    return %arg0, %c0_i32 : i32, i32
  }
}

</mosaic_0001>

<llo_original>
// kernel: tpu_custom_call.1
$region0: #{tpu_custom_call.1}
  #allocation0 [shape = 'u32[]', space=smem, size = 0x4, offset = 0x4, fixed_abs, tag = 'smem constant byte address 0x4 - core index']
  #allocation1 [shape = 'u32[72,128]{1,0:T(1,128)}', space=vmem, size = 0x9000, scoped, tag = 'internal scratch']
  #allocation2 [shape = 'f32[1,1]{1,0:T(1,128)S(1)}', space=vmem, size = 0x200, scoped, tag = 'scoped memory for tpu_custom_call.1']
  %s0 = inlined_call_operand.vmem [shape: bf16[32,16], index: 0, kind: input, shape index: {}]
  %s1 = inlined_call_operand.vmem [shape: bf16[2,32], index: 1, kind: input, shape index: {}]
  %s2 = inlined_call_operand.vmem [shape: bf16[16,128], index: 2, kind: input, shape index: {}]
  %s3 = inlined_call_operand.vmem [shape: f32[1,128], index: 3, kind: input, shape index: {}]
  %s4 = inlined_call_operand.hbm [shape: bf16[128,1024], index: 4, kind: input, shape index: {}]
  %s5 = inlined_call_operand.vmem [shape: f32[1,1024], index: 5, kind: input, shape index: {}]
  %s6 = inlined_call_operand.hbm [shape: bf16[1024,256], index: 6, kind: input, shape index: {}]
  %s7 = inlined_call_operand.vmem [shape: f32[1,256], index: 7, kind: input, shape index: {}]
  %s8 = inlined_call_operand.vmem [shape: f32[1,256], index: 8, kind: input, shape index: {}]
  %s9 = inlined_call_operand.<no memory space> [shape: f32[1,1], index: 9, kind: input, shape index: {}]
  %s10 = inlined_call_operand.vmem [shape: f32[2,1], index: 10, kind: output, shape index: {}]
  %s11 = sld [smem:[#allocation0]]
  $region58: #{tpu_custom_call.1} parent=0
    _
  %s13 = ssub.s32 1, %s11
  %s14 = scalar_select 0, %s13, %s11
  %v15 = vstv %s9
  %16 = vst [vmem:[#allocation2] sm:$0x1] %v15
  $region1: #{tpu_custom_call.1} parent=0
    #allocation3 [shape = 'u8[262144]{0}', space=vmem, size = 0x40000, scoped, tag = 'input window, operand 4, single buffered']
    #allocation4 [shape = 's32[1]{0}', space=sflag, size = 0x4, scoped, tag = 'scoped memory for tpu_custom_call.1']
    #allocation5 [shape = 'u8[524288]{0}', space=vmem, size = 0x80000, scoped, tag = 'input window, operand 6, single buffered']
    #allocation6 [shape = 's32[1]{0}', space=sflag, size = 0x4, scoped, tag = 'scoped memory for tpu_custom_call.1']
    %17 = vsyncpa [#allocation4], 0
    %18 = vsyncpa [#allocation6], 0
    // Predicated region
    $region2: #{tpu_custom_call.1} parent=1 // pred_check
      _
    $region3: #{tpu_custom_call.1} parent=1 // pred_check_branch
      %20 = sbr.rel (0) target = $region5
    $region4: #{tpu_custom_call.1} parent=1 // pred_region
      _
    $region5: #{tpu_custom_call.1} parent=1 // pred_fallthru
      _
    // Predicated region
    $region6: #{tpu_custom_call.1} parent=1 // pred_check
      _
    $region7: #{tpu_custom_call.1} parent=1 // pred_check_branch
      %22 = sbr.rel (0) target = $region9
    $region8: #{tpu_custom_call.1} parent=1 // pred_region
      _
    $region9: #{tpu_custom_call.1} parent=1 // pred_fallthru
      _
    // Predicated region
    $region10: #{tpu_custom_call.1} parent=1 // pred_check
      _
    $region11: #{tpu_custom_call.1} parent=1 // pred_check_branch
      %24 = sbr.rel (0) target = $region13
    $region12: #{tpu_custom_call.1} parent=1 // pred_region
      _
    $region13: #{tpu_custom_call.1} parent=1 // pred_fallthru
      _
    // Predicated region
    $region14: #{tpu_custom_call.1} parent=1 // pred_check
      _
    $region15: #{tpu_custom_call.1} parent=1 // pred_check_branch
      %26 = sbr.rel (0) target = $region17
    $region16: #{tpu_custom_call.1} parent=1 // pred_region
      _
    $region17: #{tpu_custom_call.1} parent=1 // pred_fallthru
      _
    // Predicated region
    $region18: #{tpu_custom_call.1} parent=1 // pred_check
      _
    $region19: #{tpu_custom_call.1} parent=1 // pred_check_branch
      %28 = sbr.rel (0) target = $region21
    $region20: #{tpu_custom_call.1} parent=1 // pred_region
      %30 = vsyncadd [#allocation4], 0
      %s31 = sshll.u32 %s4, 4
      %s32 = int_to_ptr.hbm [resolvable:$true] %s31
      %s33 = sshll.u32 [#allocation3], 4
      %s34 = int_to_ptr.vmem [resolvable:$true] %s33
      %39 = dma.hbm_to_vmem [thread:$0]  %s32, 8192, %s34, [#allocation4], 512, 512, 32
    $region21: #{tpu_custom_call.1} parent=1 // pred_fallthru
      _
    // Predicated region
    $region22: #{tpu_custom_call.1} parent=1 // pred_check
      _
    $region23: #{tpu_custom_call.1} parent=1 // pred_check_branch
      %41 = sbr.rel (0) target = $region25
    $region24: #{tpu_custom_call.1} parent=1 // pred_region
      _
    $region25: #{tpu_custom_call.1} parent=1 // pred_fallthru
      _
    // Predicated region
    $region26: #{tpu_custom_call.1} parent=1 // pred_check
      _
    $region27: #{tpu_custom_call.1} parent=1 // pred_check_branch
      %43 = sbr.rel (0) target = $region29
    $region28: #{tpu_custom_call.1} parent=1 // pred_region
      %45 = vsyncadd [#allocation6], 0
      %s46 = sshll.u32 %s6, 4
      %s47 = int_to_ptr.hbm [resolvable:$true] %s46
      %s48 = sshll.u32 [#allocation5], 4
      %s49 = int_to_ptr.vmem [resolvable:$true] %s48
      %54 = dma.hbm_to_vmem [thread:$0]  %s47, 16384, %s49, [#allocation6], 128, 128, 8
    $region29: #{tpu_custom_call.1} parent=1 // pred_fallthru
      _
    // Predicated region
    $region30: #{tpu_custom_call.1} parent=1 // pred_check
      _
    $region31: #{tpu_custom_call.1} parent=1 // pred_check_branch
      %56 = sbr.rel (0) target = $region33
    $region32: #{tpu_custom_call.1} parent=1 // pred_region
      _
    $region33: #{tpu_custom_call.1} parent=1 // pred_fallthru
      _
    // Predicated region
    $region34: #{tpu_custom_call.1} parent=1 // pred_check
      _
    $region35: #{tpu_custom_call.1} parent=1 // pred_check_branch
      %58 = sbr.rel (0) target = $region37
    $region36: #{tpu_custom_call.1} parent=1 // pred_region
      _
    $region37: #{tpu_custom_call.1} parent=1 // pred_fallthru
      _
    // Predicated region
    $region38: #{tpu_custom_call.1} parent=1 // pred_check
      _
    $region39: #{tpu_custom_call.1} parent=1 // pred_check_branch
      %60 = sbr.rel (0) target = $region41
    $region40: #{tpu_custom_call.1} parent=1 // pred_region
      _
    $region41: #{tpu_custom_call.1} parent=1 // pred_fallthru
      _
    // Predicated region
    $region42: #{tpu_custom_call.1} parent=1 // pred_check
      _
    $region43: #{tpu_custom_call.1} parent=1 // pred_check_branch
      %62 = sbr.rel (0) target = $region45
    $region44: #{tpu_custom_call.1} parent=1 // pred_region
      %64 = dma.done [#allocation4], 8192
    $region45: #{tpu_custom_call.1} parent=1 // pred_fallthru
      _
    // Predicated region
    $region46: #{tpu_custom_call.1} parent=1 // pred_check
      _
    $region47: #{tpu_custom_call.1} parent=1 // pred_check_branch
      %66 = sbr.rel (0) target = $region49
    $region48: #{tpu_custom_call.1} parent=1 // pred_region
      %68 = dma.done [#allocation6], 16384
    $region49: #{tpu_custom_call.1} parent=1 // pred_fallthru
      _
    %v70 = vld [vmem:[%s0] sm:$0xf]
    %v71 = vld [vmem:[%s0 + $0x4] sm:$0xf]
    %v72 = vld [vmem:[%s0 + $0x8] sm:$0xf]
    %v73 = vld [vmem:[%s0 + $0xc] sm:$0xf]
    %v74 = vld [vmem:[%s2] sm:$0xf]
    %v75 = vld [vmem:[%s2 + $0x4] sm:$0xf]
    %v80 = vunpack.c.l.b16 %v70
    %v81 = vunpack.c.l.b16 %v71
    %v82 = vunpack.c.l.b16 %v72
    %v83 = vunpack.c.l.b16 %v73
    %v84 = vpack.c.b16 %v81, %v80
    %v85 = vpack.c.b16 %v83, %v82
    %v88 = vunpack.c.l.b16 %v74
    %v89 = vunpack.c.l.b16 %v75
    %v90 = vpack.c.b16 %v89, %v88
    %vm92 = vcmask 130048
    %v94 = vsel %vm92, %v84, 0
    %v97 = vsel %vm92, %v85, 0
    %99 = vmatpush.bf16.msra.mxu0 0
    %100 = vmatpush.bf16.msra.mxu0 0
    %101 = vmatpush.bf16.msra.mxu0 0
    %102 = vmatpush.bf16.msra.mxu0 0
    %103 = vmatpush.bf16.msra.mxu0 0
    %104 = vmatpush.bf16.msra.mxu0 0
    %105 = vmatpush.bf16.msra.mxu0 0
    %106 = vmatpush.bf16.msra.mxu0 %v90
    %107 = vmatmul.bf16.gmra.mxu0 %v94
    %v108 = vpop.f32.mrf.mxu0
    %v109 = vadd.f32 0.0, %v108
    %v110 = vpop.f32.mrf.mxu0
    %v111 = vadd.f32 0.0, %v110
    %112 = vmatmul.bf16.gmra.mxu0 %v97
    %v113 = vpop.f32.mrf.mxu0
    %v114 = vadd.f32 0.0, %v113
    %v115 = vpop.f32.mrf.mxu0
    %v116 = vadd.f32 0.0, %v115
    %117 = vdwg.mxu0
    %v118 = vld [vmem:[%s1] sm:$0x1]
    %v119 = vpack.c.bf16 %v111, %v109
    %v120 = vpack.c.bf16 %v116, %v114
    %v121 = vld [vmem:[%s3] sm:$0x1]
    %v123 = vperm.slane %v121, 0
    %vm125 = vcmask 261120
    %v127 = vsel %vm125, %v118, 0
    %129 = vmatpush.bf16.msra.mxu0 0
    %130 = vmatpush.bf16.msra.mxu0 0
    %131 = vmatpush.bf16.msra.mxu0 0
    %132 = vmatpush.bf16.msra.mxu0 0
    %133 = vmatpush.bf16.msra.mxu0 0
    %134 = vmatpush.bf16.msra.mxu0 0
    %135 = vmatpush.bf16.msra.mxu0 %v120
    %136 = vmatpush.bf16.msra.mxu0 %v119
    %137 = vmatmul.bf16.gmra.mxu0 %v127
    %v138 = vpop.f32.mrf.mxu0
    %v139 = vadd.f32 %v123, %v138
    %v140 = vpop.f32.mrf.mxu0
    %141 = vdwg.mxu0
    %v142 = vpack.c.bf16 %v139, %v139
    %v143 = vld [vmem:[#allocation3] sm:$0xff]
    %v144 = vld [vmem:[#allocation3 + $0x8] sm:$0xff]
    %v145 = vld [vmem:[#allocation3 + $0x10] sm:$0xff]
    %v146 = vld [vmem:[#allocation3 + $0x18] sm:$0xff]
    %v147 = vld [vmem:[#allocation3 + $0x20] sm:$0xff]
    %v148 = vld [vmem:[#allocation3 + $0x28] sm:$0xff]
    %v149 = vld [vmem:[#allocation3 + $0x30] sm:$0xff]
    %v150 = vld [vmem:[#allocation3 + $0x38] sm:$0xff]
    %v151 = vld [vmem:[#allocation3 + $0x40] sm:$0xff]
    %v152 = vld [vmem:[#allocation3 + $0x48] sm:$0xff]
    %v153 = vld [vmem:[#allocation3 + $0x50] sm:$0xff]
    %v154 = vld [vmem:[#allocation3 + $0x58] sm:$0xff]
    %v155 = vld [vmem:[#allocation3 + $0x60] sm:$0xff]
    %v156 = vld [vmem:[#allocation3 + $0x68] sm:$0xff]
    %v157 = vld [vmem:[#allocation3 + $0x70] sm:$0xff]
    %v158 = vld [vmem:[#allocation3 + $0x78] sm:$0xff]
    %v159 = vld [vmem:[#allocation3 + $0x80] sm:$0xff]
    %v160 = vld [vmem:[#allocation3 + $0x88] sm:$0xff]
    %v161 = vld [vmem:[#allocation3 + $0x90] sm:$0xff]
    %v162 = vld [vmem:[#allocation3 + $0x98] sm:$0xff]
    %v163 = vld [vmem:[#allocation3 + $0xa0] sm:$0xff]
    %v164 = vld [vmem:[#allocation3 + $0xa8] sm:$0xff]
    %v165 = vld [vmem:[#allocation3 + $0xb0] sm:$0xff]
    %v166 = vld [vmem:[#allocation3 + $0xb8] sm:$0xff]
    %v167 = vld [vmem:[#allocation3 + $0xc0] sm:$0xff]
    %v168 = vld [vmem:[#allocation3 + $0xc8] sm:$0xff]
    %v169 = vld [vmem:[#allocation3 + $0xd0] sm:$0xff]
    %v170 = vld [vmem:[#allocation3 + $0xd8] sm:$0xff]
    %v171 = vld [vmem:[#allocation3 + $0xe0] sm:$0xff]
    %v172 = vld [vmem:[#allocation3 + $0xe8] sm:$0xff]
    %v173 = vld [vmem:[#allocation3 + $0xf0] sm:$0xff]
    %v174 = vld [vmem:[#allocation3 + $0xf8] sm:$0xff]
    %v175 = vld [vmem:[#allocation3 + $0x100] sm:$0xff]
    %v176 = vld [vmem:[#allocation3 + $0x108] sm:$0xff]
    %v177 = vld [vmem:[#allocation3 + $0x110] sm:$0xff]
    %v178 = vld [vmem:[#allocation3 + $0x118] sm:$0xff]
    %v179 = vld [vmem:[#allocation3 + $0x120] sm:$0xff]
    %v180 = vld [vmem:[#allocation3 + $0x128] sm:$0xff]
    %v181 = vld [vmem:[#allocation3 + $0x130] sm:$0xff]
    %v182 = vld [vmem:[#allocation3 + $0x138] sm:$0xff]
    %v183 = vld [vmem:[#allocation3 + $0x140] sm:$0xff]
    %v184 = vld [vmem:[#allocation3 + $0x148] sm:$0xff]
    %v185 = vld [vmem:[#allocation3 + $0x150] sm:$0xff]
    %v186 = vld [vmem:[#allocation3 + $0x158] sm:$0xff]
    %v187 = vld [vmem:[#allocation3 + $0x160] sm:$0xff]
    %v188 = vld [vmem:[#allocation3 + $0x168] sm:$0xff]
    %v189 = vld [vmem:[#allocation3 + $0x170] sm:$0xff]
    %v190 = vld [vmem:[#allocation3 + $0x178] sm:$0xff]
    %v191 = vld [vmem:[#allocation3 + $0x180] sm:$0xff]
    %v192 = vld [vmem:[#allocation3 + $0x188] sm:$0xff]
    %v193 = vld [vmem:[#allocation3 + $0x190] sm:$0xff]
    %v194 = vld [vmem:[#allocation3 + $0x198] sm:$0xff]
    %v195 = vld [vmem:[#allocation3 + $0x1a0] sm:$0xff]
    %v196 = vld [vmem:[#allocation3 + $0x1a8] sm:$0xff]
    %v197 = vld [vmem:[#allocation3 + $0x1b0] sm:$0xff]
    %v198 = vld [vmem:[#allocation3 + $0x1b8] sm:$0xff]
    %v199 = vld [vmem:[#allocation3 + $0x1c0] sm:$0xff]
    %v200 = vld [vmem:[#allocation3 + $0x1c8] sm:$0xff]
    %v201 = vld [vmem:[#allocation3 + $0x1d0] sm:$0xff]
    %v202 = vld [vmem:[#allocation3 + $0x1d8] sm:$0xff]
    %v203 = vld [vmem:[#allocation3 + $0x1e0] sm:$0xff]
    %v204 = vld [vmem:[#allocation3 + $0x1e8] sm:$0xff]
    %v205 = vld [vmem:[#allocation3 + $0x1f0] sm:$0xff]
    %v206 = vld [vmem:[#allocation3 + $0x1f8] sm:$0xff]
    %v207 = vld [vmem:[%s5] sm:$0xff]
    %v209 = vperm.slane %v207, 0
    %v210 = vperm.slane %v207, 1
    %v211 = vperm.slane %v207, 2
    %v212 = vperm.slane %v207, 3
    %v213 = vperm.slane %v207, 4
    %v214 = vperm.slane %v207, 5
    %v215 = vperm.slane %v207, 6
    %v216 = vperm.slane %v207, 7
    %v289 = vunpack.c.l.b16 %v143
    %v290 = vunpack.c.h.b16 %v143
    %v291 = vunpack.c.l.b16 %v144
    %v292 = vunpack.c.h.b16 %v144
    %v293 = vunpack.c.l.b16 %v145
    %v294 = vunpack.c.h.b16 %v145
    %v295 = vunpack.c.l.b16 %v146
    %v296 = vunpack.c.h.b16 %v146
    %v297 = vunpack.c.l.b16 %v147
    %v298 = vunpack.c.h.b16 %v147
    %v299 = vunpack.c.l.b16 %v148
    %v300 = vunpack.c.h.b16 %v148
    %v301 = vunpack.c.l.b16 %v149
    %v302 = vunpack.c.h.b16 %v149
    %v303 = vunpack.c.l.b16 %v150
    %v304 = vunpack.c.h.b16 %v150
    %v305 = vunpack.c.l.b16 %v151
    %v306 = vunpack.c.h.b16 %v151
    %v307 = vunpack.c.l.b16 %v152
    %v308 = vunpack.c.h.b16 %v152
    %v309 = vunpack.c.l.b16 %v153
    %v310 = vunpack.c.h.b16 %v153
    %v311 = vunpack.c.l.b16 %v154
    %v312 = vunpack.c.h.b16 %v154
    %v313 = vunpack.c.l.b16 %v155
    %v314 = vunpack.c.h.b16 %v155
    %v315 = vunpack.c.l.b16 %v156
    %v316 = vunpack.c.h.b16 %v156
    %v317 = vunpack.c.l.b16 %v157
    %v318 = vunpack.c.h.b16 %v157
    %v319 = vunpack.c.l.b16 %v158
    %v320 = vunpack.c.h.b16 %v158
    %v321 = vunpack.c.l.b16 %v159
    %v322 = vunpack.c.h.b16 %v159
    %v323 = vunpack.c.l.b16 %v160
    %v324 = vunpack.c.h.b16 %v160
    %v325 = vunpack.c.l.b16 %v161
    %v326 = vunpack.c.h.b16 %v161
    %v327 = vunpack.c.l.b16 %v162
    %v328 = vunpack.c.h.b16 %v162
    %v329 = vunpack.c.l.b16 %v163
    %v330 = vunpack.c.h.b16 %v163
    %v331 = vunpack.c.l.b16 %v164
    %v332 = vunpack.c.h.b16 %v164
    %v333 = vunpack.c.l.b16 %v165
    %v334 = vunpack.c.h.b16 %v165
    %v335 = vunpack.c.l.b16 %v166
    %v336 = vunpack.c.h.b16 %v166
    %v337 = vunpack.c.l.b16 %v167
    %v338 = vunpack.c.h.b16 %v167
    %v339 = vunpack.c.l.b16 %v168
    %v340 = vunpack.c.h.b16 %v168
    %v341 = vunpack.c.l.b16 %v169
    %v342 = vunpack.c.h.b16 %v169
    %v343 = vunpack.c.l.b16 %v170
    %v344 = vunpack.c.h.b16 %v170
    %v345 = vunpack.c.l.b16 %v171
    %v346 = vunpack.c.h.b16 %v171
    %v347 = vunpack.c.l.b16 %v172
    %v348 = vunpack.c.h.b16 %v172
    %v349 = vunpack.c.l.b16 %v173
    %v350 = vunpack.c.h.b16 %v173
    %v351 = vunpack.c.l.b16 %v174
    %v352 = vunpack.c.h.b16 %v174
    %v353 = vunpack.c.l.b16 %v175
    %v354 = vunpack.c.h.b16 %v175
    %v355 = vunpack.c.l.b16 %v176
    %v356 = vunpack.c.h.b16 %v176
    %v357 = vunpack.c.l.b16 %v177
    %v358 = vunpack.c.h.b16 %v177
    %v359 = vunpack.c.l.b16 %v178
    %v360 = vunpack.c.h.b16 %v178
    %v361 = vunpack.c.l.b16 %v179
    %v362 = vunpack.c.h.b16 %v179
    %v363 = vunpack.c.l.b16 %v180
    %v364 = vunpack.c.h.b16 %v180
    %v365 = vunpack.c.l.b16 %v181
    %v366 = vunpack.c.h.b16 %v181
    %v367 = vunpack.c.l.b16 %v182
    %v368 = vunpack.c.h.b16 %v182
    %v369 = vunpack.c.l.b16 %v183
    %v370 = vunpack.c.h.b16 %v183
    %v371 = vunpack.c.l.b16 %v184
    %v372 = vunpack.c.h.b16 %v184
    %v373 = vunpack.c.l.b16 %v185
    %v374 = vunpack.c.h.b16 %v185
    %v375 = vunpack.c.l.b16 %v186
    %v376 = vunpack.c.h.b16 %v186
    %v377 = vunpack.c.l.b16 %v187
    %v378 = vunpack.c.h.b16 %v187
    %v379 = vunpack.c.l.b16 %v188
    %v380 = vunpack.c.h.b16 %v188
    %v381 = vunpack.c.l.b16 %v189
    %v382 = vunpack.c.h.b16 %v189
    %v383 = vunpack.c.l.b16 %v190
    %v384 = vunpack.c.h.b16 %v190
    %v385 = vunpack.c.l.b16 %v191
    %v386 = vunpack.c.h.b16 %v191
    %v387 = vunpack.c.l.b16 %v192
    %v388 = vunpack.c.h.b16 %v192
    %v389 = vunpack.c.l.b16 %v193
    %v390 = vunpack.c.h.b16 %v193
    %v391 = vunpack.c.l.b16 %v194
    %v392 = vunpack.c.h.b16 %v194
    %v393 = vunpack.c.l.b16 %v195
    %v394 = vunpack.c.h.b16 %v195
    %v395 = vunpack.c.l.b16 %v196
    %v396 = vunpack.c.h.b16 %v196
    %v397 = vunpack.c.l.b16 %v197
    %v398 = vunpack.c.h.b16 %v197
    %v399 = vunpack.c.l.b16 %v198
    %v400 = vunpack.c.h.b16 %v198
    %v401 = vunpack.c.l.b16 %v199
    %v402 = vunpack.c.h.b16 %v199
    %v403 = vunpack.c.l.b16 %v200
    %v404 = vunpack.c.h.b16 %v200
    %v405 = vunpack.c.l.b16 %v201
    %v406 = vunpack.c.h.b16 %v201
    %v407 = vunpack.c.l.b16 %v202
    %v408 = vunpack.c.h.b16 %v202
    %v409 = vunpack.c.l.b16 %v203
    %v410 = vunpack.c.h.b16 %v203
    %v411 = vunpack.c.l.b16 %v204
    %v412 = vunpack.c.h.b16 %v204
    %v413 = vunpack.c.l.b16 %v205
    %v414 = vunpack.c.h.b16 %v205
    %v415 = vunpack.c.l.b16 %v206
    %v416 = vunpack.c.h.b16 %v206
    %v417 = vpack.c.b16 %v297, %v289
    %v418 = vpack.c.b16 %v298, %v290
    %v419 = vpack.c.b16 %v299, %v291
    %v420 = vpack.c.b16 %v300, %v292
    %v421 = vpack.c.b16 %v301, %v293
    %v422 = vpack.c.b16 %v302, %v294
    %v423 = vpack.c.b16 %v303, %v295
    %v424 = vpack.c.b16 %v304, %v296
    %v425 = vpack.c.b16 %v313, %v305
    %v426 = vpack.c.b16 %v314, %v306
    %v427 = vpack.c.b16 %v315, %v307
    %v428 = vpack.c.b16 %v316, %v308
    %v429 = vpack.c.b16 %v317, %v309
    %v430 = vpack.c.b16 %v318, %v310
    %v431 = vpack.c.b16 %v319, %v311
    %v432 = vpack.c.b16 %v320, %v312
    %v433 = vpack.c.b16 %v329, %v321
    %v434 = vpack.c.b16 %v330, %v322
    %v435 = vpack.c.b16 %v331, %v323
    %v436 = vpack.c.b16 %v332, %v324
    %v437 = vpack.c.b16 %v333, %v325
    %v438 = vpack.c.b16 %v334, %v326
    %v439 = vpack.c.b16 %v335, %v327
    %v440 = vpack.c.b16 %v336, %v328
    %v441 = vpack.c.b16 %v345, %v337
    %v442 = vpack.c.b16 %v346, %v338
    %v443 = vpack.c.b16 %v347, %v339
    %v444 = vpack.c.b16 %v348, %v340
    %v445 = vpack.c.b16 %v349, %v341
    %v446 = vpack.c.b16 %v350, %v342
    %v447 = vpack.c.b16 %v351, %v343
    %v448 = vpack.c.b16 %v352, %v344
    %v449 = vpack.c.b16 %v361, %v353
    %v450 = vpack.c.b16 %v362, %v354
    %v451 = vpack.c.b16 %v363, %v355
    %v452 = vpack.c.b16 %v364, %v356
    %v453 = vpack.c.b16 %v365, %v357
    %v454 = vpack.c.b16 %v366, %v358
    %v455 = vpack.c.b16 %v367, %v359
    %v456 = vpack.c.b16 %v368, %v360
    %v457 = vpack.c.b16 %v377, %v369
    %v458 = vpack.c.b16 %v378, %v370
    %v459 = vpack.c.b16 %v379, %v371
    %v460 = vpack.c.b16 %v380, %v372
    %v461 = vpack.c.b16 %v381, %v373
    %v462 = vpack.c.b16 %v382, %v374
    %v463 = vpack.c.b16 %v383, %v375
    %v464 = vpack.c.b16 %v384, %v376
    %v465 = vpack.c.b16 %v393, %v385
    %v466 = vpack.c.b16 %v394, %v386
    %v467 = vpack.c.b16 %v395, %v387
    %v468 = vpack.c.b16 %v396, %v388
    %v469 = vpack.c.b16 %v397, %v389
    %v470 = vpack.c.b16 %v398, %v390
    %v471 = vpack.c.b16 %v399, %v391
    %v472 = vpack.c.b16 %v400, %v392
    %v473 = vpack.c.b16 %v409, %v401
    %v474 = vpack.c.b16 %v410, %v402
    %v475 = vpack.c.b16 %v411, %v403
    %v476 = vpack.c.b16 %v412, %v404
    %v477 = vpack.c.b16 %v413, %v405
    %v478 = vpack.c.b16 %v414, %v406
    %v479 = vpack.c.b16 %v415, %v407
    %v480 = vpack.c.b16 %v416, %v408
    %545 = vmatpush.bf16.msra.mxu0 %v473
    %546 = vmatpush.bf16.msra.mxu0 %v465
    %547 = vmatpush.bf16.msra.mxu0 %v457
    %548 = vmatpush.bf16.msra.mxu0 %v449
    %549 = vmatpush.bf16.msra.mxu0 %v441
    %550 = vmatpush.bf16.msra.mxu0 %v433
    %551 = vmatpush.bf16.msra.mxu0 %v425
    %552 = vmatpush.bf16.msra.mxu0 %v417
    %553 = vmatmul.bf16.gmra.mxu0 %v142
    %v554 = vpop.f32.mrf.mxu0
    %v555 = vadd.f32 %v209, %v554
    %v556 = vpop.f32.mrf.mxu0
    %557 = vdwg.mxu0
    %558 = vmatpush.bf16.msra.mxu0 %v474
    %559 = vmatpush.bf16.msra.mxu0 %v466
    %560 = vmatpush.bf16.msra.mxu0 %v458
    %561 = vmatpush.bf16.msra.mxu0 %v450
    %562 = vmatpush.bf16.msra.mxu0 %v442
    %563 = vmatpush.bf16.msra.mxu0 %v434
    %564 = vmatpush.bf16.msra.mxu0 %v426
    %565 = vmatpush.bf16.msra.mxu0 %v418
    %566 = vmatmul.bf16.gmra.mxu0 %v142
    %v567 = vpop.f32.mrf.mxu0
    %v568 = vadd.f32 %v210, %v567
    %v569 = vpop.f32.mrf.mxu0
    %570 = vdwg.mxu0
    %571 = vmatpush.bf16.msra.mxu0 %v475
    %572 = vmatpush.bf16.msra.mxu0 %v467
    %573 = vmatpush.bf16.msra.mxu0 %v459
    %574 = vmatpush.bf16.msra.mxu0 %v451
    %575 = vmatpush.bf16.msra.mxu0 %v443
    %576 = vmatpush.bf16.msra.mxu0 %v435
    %577 = vmatpush.bf16.msra.mxu0 %v427
    %578 = vmatpush.bf16.msra.mxu0 %v419
    %579 = vmatmul.bf16.gmra.mxu0 %v142
    %v580 = vpop.f32.mrf.mxu0
    %v581 = vadd.f32 %v211, %v580
    %v582 = vpop.f32.mrf.mxu0
    %583 = vdwg.mxu0
    %584 = vmatpush.bf16.msra.mxu0 %v476
    %585 = vmatpush.bf16.msra.mxu0 %v468
    %586 = vmatpush.bf16.msra.mxu0 %v460
    %587 = vmatpush.bf16.msra.mxu0 %v452
    %588 = vmatpush.bf16.msra.mxu0 %v444
    %589 = vmatpush.bf16.msra.mxu0 %v436
    %590 = vmatpush.bf16.msra.mxu0 %v428
    %591 = vmatpush.bf16.msra.mxu0 %v420
    %592 = vmatmul.bf16.gmra.mxu0 %v142
    %v593 = vpop.f32.mrf.mxu0
    %v594 = vadd.f32 %v212, %v593
    %v595 = vpop.f32.mrf.mxu0
    %596 = vdwg.mxu0
    %597 = vmatpush.bf16.msra.mxu0 %v477
    %598 = vmatpush.bf16.msra.mxu0 %v469
    %599 = vmatpush.bf16.msra.mxu0 %v461
    %600 = vmatpush.bf16.msra.mxu0 %v453
    %601 = vmatpush.bf16.msra.mxu0 %v445
    %602 = vmatpush.bf16.msra.mxu0 %v437
    %603 = vmatpush.bf16.msra.mxu0 %v429
    %604 = vmatpush.bf16.msra.mxu0 %v421
    %605 = vmatmul.bf16.gmra.mxu0 %v142
    %v606 = vpop.f32.mrf.mxu0
    %v607 = vadd.f32 %v213, %v606
    %v608 = vpop.f32.mrf.mxu0
    %609 = vdwg.mxu0
    %610 = vmatpush.bf16.msra.mxu0 %v478
    %611 = vmatpush.bf16.msra.mxu0 %v470
    %612 = vmatpush.bf16.msra.mxu0 %v462
    %613 = vmatpush.bf16.msra.mxu0 %v454
    %614 = vmatpush.bf16.msra.mxu0 %v446
    %615 = vmatpush.bf16.msra.mxu0 %v438
    %616 = vmatpush.bf16.msra.mxu0 %v430
    %617 = vmatpush.bf16.msra.mxu0 %v422
    %618 = vmatmul.bf16.gmra.mxu0 %v142
    %v619 = vpop.f32.mrf.mxu0
    %v620 = vadd.f32 %v214, %v619
    %v621 = vpop.f32.mrf.mxu0
    %622 = vdwg.mxu0
    %623 = vmatpush.bf16.msra.mxu0 %v479
    %624 = vmatpush.bf16.msra.mxu0 %v471
    %625 = vmatpush.bf16.msra.mxu0 %v463
    %626 = vmatpush.bf16.msra.mxu0 %v455
    %627 = vmatpush.bf16.msra.mxu0 %v447
    %628 = vmatpush.bf16.msra.mxu0 %v439
    %629 = vmatpush.bf16.msra.mxu0 %v431
    %630 = vmatpush.bf16.msra.mxu0 %v423
    %631 = vmatmul.bf16.gmra.mxu0 %v142
    %v632 = vpop.f32.mrf.mxu0
    %v633 = vadd.f32 %v215, %v632
    %v634 = vpop.f32.mrf.mxu0
    %635 = vdwg.mxu0
    %636 = vmatpush.bf16.msra.mxu0 %v480
    %637 = vmatpush.bf16.msra.mxu0 %v472
    %638 = vmatpush.bf16.msra.mxu0 %v464
    %639 = vmatpush.bf16.msra.mxu0 %v456
    %640 = vmatpush.bf16.msra.mxu0 %v448
    %641 = vmatpush.bf16.msra.mxu0 %v440
    %642 = vmatpush.bf16.msra.mxu0 %v432
    %643 = vmatpush.bf16.msra.mxu0 %v424
    %644 = vmatmul.bf16.gmra.mxu0 %v142
    %v645 = vpop.f32.mrf.mxu0
    %v646 = vadd.f32 %v216, %v645
    %v647 = vpop.f32.mrf.mxu0
    %648 = vdwg.mxu0
    %vm649 = vcmp.ge.f32.partialorder %v555, 0.0
    %vm650 = vcmp.ge.f32.partialorder %v568, 0.0
    %vm651 = vcmp.ge.f32.partialorder %v581, 0.0
    %vm652 = vcmp.ge.f32.partialorder %v594, 0.0
    %vm653 = vcmp.ge.f32.partialorder %v607, 0.0
    %vm654 = vcmp.ge.f32.partialorder %v620, 0.0
    %vm655 = vcmp.ge.f32.partialorder %v633, 0.0
    %vm656 = vcmp.ge.f32.partialorder %v646, 0.0
    %v657 = vmul.f32 %v555, 0.01
    %v658 = vmul.f32 %v568, 0.01
    %v659 = vmul.f32 %v581, 0.01
    %v660 = vmul.f32 %v594, 0.01
    %v661 = vmul.f32 %v607, 0.01
    %v662 = vmul.f32 %v620, 0.01
    %v663 = vmul.f32 %v633, 0.01
    %v664 = vmul.f32 %v646, 0.01
    %v665 = vsel %vm649, %v555, %v657
    %v666 = vsel %vm650, %v568, %v658
    %v667 = vsel %vm651, %v581, %v659
    %v668 = vsel %vm652, %v594, %v660
    %v669 = vsel %vm653, %v607, %v661
    %v670 = vsel %vm654, %v620, %v662
    %v671 = vsel %vm655, %v633, %v663
    %v672 = vsel %vm656, %v646, %v664
    %v673 = vpack.c.bf16 %v665, %v665
    %v674 = vpack.c.bf16 %v666, %v666
    %v675 = vpack.c.bf16 %v667, %v667
    %v676 = vpack.c.bf16 %v668, %v668
    %v677 = vpack.c.bf16 %v669, %v669
    %v678 = vpack.c.bf16 %v670, %v670
    %v679 = vpack.c.bf16 %v671, %v671
    %v680 = vpack.c.bf16 %v672, %v672
    %v681 = vld [vmem:[#allocation5] sm:$0xff]
    %v682 = vld [vmem:[#allocation5 + $0x8] sm:$0xff]
    %v683 = vld [vmem:[#allocation5 + $0x10] sm:$0xff]
    %v684 = vld [vmem:[#allocation5 + $0x18] sm:$0xff]
    %v685 = vld [vmem:[#allocation5 + $0x20] sm:$0xff]
    %v686 = vld [vmem:[#allocation5 + $0x28] sm:$0xff]
    %v687 = vld [vmem:[#allocation5 + $0x30] sm:$0xff]
    %v688 = vld [vmem:[#allocation5 + $0x38] sm:$0xff]
    %v689 = vld [vmem:[#allocation5 + $0x40] sm:$0xff]
    %v690 = vld [vmem:[#allocation5 + $0x48] sm:$0xff]
    %v691 = vld [vmem:[#allocation5 + $0x50] sm:$0xff]
    %v692 = vld [vmem:[#allocation5 + $0x58] sm:$0xff]
    %v693 = vld [vmem:[#allocation5 + $0x60] sm:$0xff]
    %v694 = vld [vmem:[#allocation5 + $0x68] sm:$0xff]
    %v695 = vld [vmem:[#allocation5 + $0x70] sm:$0xff]
    %v696 = vld [vmem:[#allocation5 + $0x78] sm:$0xff]
    %v697 = vld [vmem:[#allocation5 + $0x80] sm:$0xff]
    %v698 = vld [vmem:[#allocation5 + $0x88] sm:$0xff]
    %v699 = vld [vmem:[#allocation5 + $0x90] sm:$0xff]
    %v700 = vld [vmem:[#allocation5 + $0x98] sm:$0xff]
    %v701 = vld [vmem:[#allocation5 + $0xa0] sm:$0xff]
    %v702 = vld [vmem:[#allocation5 + $0xa8] sm:$0xff]
    %v703 = vld [vmem:[#allocation5 + $0xb0] sm:$0xff]
    %v704 = vld [vmem:[#allocation5 + $0xb8] sm:$0xff]
    %v705 = vld [vmem:[#allocation5 + $0xc0] sm:$0xff]
    %v706 = vld [vmem:[#allocation5 + $0xc8] sm:$0xff]
    %v707 = vld [vmem:[#allocation5 + $0xd0] sm:$0xff]
    %v708 = vld [vmem:[#allocation5 + $0xd8] sm:$0xff]
    %v709 = vld [vmem:[#allocation5 + $0xe0] sm:$0xff]
    %v710 = vld [vmem:[#allocation5 + $0xe8] sm:$0xff]
    %v711 = vld [vmem:[#allocation5 + $0xf0] sm:$0xff]
    %v712 = vld [vmem:[#allocation5 + $0xf8] sm:$0xff]
    %v713 = vld [vmem:[#allocation5 + $0x100] sm:$0xff]
    %v714 = vld [vmem:[#allocation5 + $0x108] sm:$0xff]
    %v715 = vld [vmem:[#allocation5 + $0x110] sm:$0xff]
    %v716 = vld [vmem:[#allocation5 + $0x118] sm:$0xff]
    %v717 = vld [vmem:[#allocation5 + $0x120] sm:$0xff]
    %v718 = vld [vmem:[#allocation5 + $0x128] sm:$0xff]
    %v719 = vld [vmem:[#allocation5 + $0x130] sm:$0xff]
    %v720 = vld [vmem:[#allocation5 + $0x138] sm:$0xff]
    %v721 = vld [vmem:[#allocation5 + $0x140] sm:$0xff]
    %v722 = vld [vmem:[#allocation5 + $0x148] sm:$0xff]
    %v723 = vld [vmem:[#allocation5 + $0x150] sm:$0xff]
    %v724 = vld [vmem:[#allocation5 + $0x158] sm:$0xff]
    %v725 = vld [vmem:[#allocation5 + $0x160] sm:$0xff]
    %v726 = vld [vmem:[#allocation5 + $0x168] sm:$0xff]
    %v727 = vld [vmem:[#allocation5 + $0x170] sm:$0xff]
    %v728 = vld [vmem:[#allocation5 + $0x178] sm:$0xff]
    %v729 = vld [vmem:[#allocation5 + $0x180] sm:$0xff]
    %v730 = vld [vmem:[#allocation5 + $0x188] sm:$0xff]
    %v731 = vld [vmem:[#allocation5 + $0x190] sm:$0xff]
    %v732 = vld [vmem:[#allocation5 + $0x198] sm:$0xff]
    %v733 = vld [vmem:[#allocation5 + $0x1a0] sm:$0xff]
    %v734 = vld [vmem:[#allocation5 + $0x1a8] sm:$0xff]
    %v735 = vld [vmem:[#allocation5 + $0x1b0] sm:$0xff]
    %v736 = vld [vmem:[#allocation5 + $0x1b8] sm:$0xff]
    %v737 = vld [vmem:[#allocation5 + $0x1c0] sm:$0xff]
    %v738 = vld [vmem:[#allocation5 + $0x1c8] sm:$0xff]
    %v739 = vld [vmem:[#allocation5 + $0x1d0] sm:$0xff]
    %v740 = vld [vmem:[#allocation5 + $0x1d8] sm:$0xff]
    %v741 = vld [vmem:[#allocation5 + $0x1e0] sm:$0xff]
    %v742 = vld [vmem:[#allocation5 + $0x1e8] sm:$0xff]
    %v743 = vld [vmem:[#allocation5 + $0x1f0] sm:$0xff]
    %v744 = vld [vmem:[#allocation5 + $0x1f8] sm:$0xff]
    %v745 = vld [vmem:[#allocation5 + $0x200] sm:$0xff]
    %v746 = vld [vmem:[#allocation5 + $0x208] sm:$0xff]
    %v747 = vld [vmem:[#allocation5 + $0x210] sm:$0xff]
    %v748 = vld [vmem:[#allocation5 + $0x218] sm:$0xff]
    %v749 = vld [vmem:[#allocation5 + $0x220] sm:$0xff]
    %v750 = vld [vmem:[#allocation5 + $0x228] sm:$0xff]
    %v751 = vld [vmem:[#allocation5 + $0x230] sm:$0xff]
    %v752 = vld [vmem:[#allocation5 + $0x238] sm:$0xff]
    %v753 = vld [vmem:[#allocation5 + $0x240] sm:$0xff]
    %v754 = vld [vmem:[#allocation5 + $0x248] sm:$0xff]
    %v755 = vld [vmem:[#allocation5 + $0x250] sm:$0xff]
    %v756 = vld [vmem:[#allocation5 + $0x258] sm:$0xff]
    %v757 = vld [vmem:[#allocation5 + $0x260] sm:$0xff]
    %v758 = vld [vmem:[#allocation5 + $0x268] sm:$0xff]
    %v759 = vld [vmem:[#allocation5 + $0x270] sm:$0xff]
    %v760 = vld [vmem:[#allocation5 + $0x278] sm:$0xff]
    %v761 = vld [vmem:[#allocation5 + $0x280] sm:$0xff]
    %v762 = vld [vmem:[#allocation5 + $0x288] sm:$0xff]
    %v763 = vld [vmem:[#allocation5 + $0x290] sm:$0xff]
    %v764 = vld [vmem:[#allocation5 + $0x298] sm:$0xff]
    %v765 = vld [vmem:[#allocation5 + $0x2a0] sm:$0xff]
    %v766 = vld [vmem:[#allocation5 + $0x2a8] sm:$0xff]
    %v767 = vld [vmem:[#allocation5 + $0x2b0] sm:$0xff]
    %v768 = vld [vmem:[#allocation5 + $0x2b8] sm:$0xff]
    %v769 = vld [vmem:[#allocation5 + $0x2c0] sm:$0xff]
    %v770 = vld [vmem:[#allocation5 + $0x2c8] sm:$0xff]
    %v771 = vld [vmem:[#allocation5 + $0x2d0] sm:$0xff]
    %v772 = vld [vmem:[#allocation5 + $0x2d8] sm:$0xff]
    %v773 = vld [vmem:[#allocation5 + $0x2e0] sm:$0xff]
    %v774 = vld [vmem:[#allocation5 + $0x2e8] sm:$0xff]
    %v775 = vld [vmem:[#allocation5 + $0x2f0] sm:$0xff]
    %v776 = vld [vmem:[#allocation5 + $0x2f8] sm:$0xff]
    %v777 = vld [vmem:[#allocation5 + $0x300] sm:$0xff]
    %v778 = vld [vmem:[#allocation5 + $0x308] sm:$0xff]
    %v779 = vld [vmem:[#allocation5 + $0x310] sm:$0xff]
    %v780 = vld [vmem:[#allocation5 + $0x318] sm:$0xff]
    %v781 = vld [vmem:[#allocation5 + $0x320] sm:$0xff]
    %v782 = vld [vmem:[#allocation5 + $0x328] sm:$0xff]
    %v783 = vld [vmem:[#allocation5 + $0x330] sm:$0xff]
    %v784 = vld [vmem:[#allocation5 + $0x338] sm:$0xff]
    %v785 = vld [vmem:[#allocation5 + $0x340] sm:$0xff]
    %v786 = vld [vmem:[#allocation5 + $0x348] sm:$0xff]
    %v787 = vld [vmem:[#allocation5 + $0x350] sm:$0xff]
    %v788 = vld [vmem:[#allocation5 + $0x358] sm:$0xff]
    %v789 = vld [vmem:[#allocation5 + $0x360] sm:$0xff]
    %v790 = vld [vmem:[#allocation5 + $0x368] sm:$0xff]
    %v791 = vld [vmem:[#allocation5 + $0x370] sm:$0xff]
    %v792 = vld [vmem:[#allocation5 + $0x378] sm:$0xff]
    %v793 = vld [vmem:[#allocation5 + $0x380] sm:$0xff]
    %v794 = vld [vmem:[#allocation5 + $0x388] sm:$0xff]
    %v795 = vld [vmem:[#allocation5 + $0x390] sm:$0xff]
    %v796 = vld [vmem:[#allocation5 + $0x398] sm:$0xff]
    %v797 = vld [vmem:[#allocation5 + $0x3a0] sm:$0xff]
    %v798 = vld [vmem:[#allocation5 + $0x3a8] sm:$0xff]
    %v799 = vld [vmem:[#allocation5 + $0x3b0] sm:$0xff]
    %v800 = vld [vmem:[#allocation5 + $0x3b8] sm:$0xff]
    %v801 = vld [vmem:[#allocation5 + $0x3c0] sm:$0xff]
    %v802 = vld [vmem:[#allocation5 + $0x3c8] sm:$0xff]
    %v803 = vld [vmem:[#allocation5 + $0x3d0] sm:$0xff]
    %v804 = vld [vmem:[#allocation5 + $0x3d8] sm:$0xff]
    %v805 = vld [vmem:[#allocation5 + $0x3e0] sm:$0xff]
    %v806 = vld [vmem:[#allocation5 + $0x3e8] sm:$0xff]
    %v807 = vld [vmem:[#allocation5 + $0x3f0] sm:$0xff]
    %v808 = vld [vmem:[#allocation5 + $0x3f8] sm:$0xff]
    %v809 = vld [vmem:[%s7] sm:$0x3]
    %v811 = vperm.slane %v809, 0
    %v812 = vperm.slane %v809, 1
    %v943 = vunpack.c.l.b16 %v681
    %v944 = vunpack.c.h.b16 %v681
    %v945 = vunpack.c.l.b16 %v682
    %v946 = vunpack.c.h.b16 %v682
    %v947 = vunpack.c.l.b16 %v683
    %v948 = vunpack.c.h.b16 %v683
    %v949 = vunpack.c.l.b16 %v684
    %v950 = vunpack.c.h.b16 %v684
    %v951 = vunpack.c.l.b16 %v685
    %v952 = vunpack.c.h.b16 %v685
    %v953 = vunpack.c.l.b16 %v686
    %v954 = vunpack.c.h.b16 %v686
    %v955 = vunpack.c.l.b16 %v687
    %v956 = vunpack.c.h.b16 %v687
    %v957 = vunpack.c.l.b16 %v688
    %v958 = vunpack.c.h.b16 %v688
    %v959 = vunpack.c.l.b16 %v689
    %v960 = vunpack.c.h.b16 %v689
    %v961 = vunpack.c.l.b16 %v690
    %v962 = vunpack.c.h.b16 %v690
    %v963 = vunpack.c.l.b16 %v691
    %v964 = vunpack.c.h.b16 %v691
    %v965 = vunpack.c.l.b16 %v692
    %v966 = vunpack.c.h.b16 %v692
    %v967 = vunpack.c.l.b16 %v693
    %v968 = vunpack.c.h.b16 %v693
    %v969 = vunpack.c.l.b16 %v694
    %v970 = vunpack.c.h.b16 %v694
    %v971 = vunpack.c.l.b16 %v695
    %v972 = vunpack.c.h.b16 %v695
    %v973 = vunpack.c.l.b16 %v696
    %v974 = vunpack.c.h.b16 %v696
    %v975 = vunpack.c.l.b16 %v697
    %v976 = vunpack.c.h.b16 %v697
    %v977 = vunpack.c.l.b16 %v698
    %v978 = vunpack.c.h.b16 %v698
    %v979 = vunpack.c.l.b16 %v699
    %v980 = vunpack.c.h.b16 %v699
    %v981 = vunpack.c.l.b16 %v700
    %v982 = vunpack.c.h.b16 %v700
    %v983 = vunpack.c.l.b16 %v701
    %v984 = vunpack.c.h.b16 %v701
    %v985 = vunpack.c.l.b16 %v702
    %v986 = vunpack.c.h.b16 %v702
    %v987 = vunpack.c.l.b16 %v703
    %v988 = vunpack.c.h.b16 %v703
    %v989 = vunpack.c.l.b16 %v704
    %v990 = vunpack.c.h.b16 %v704
    %v991 = vunpack.c.l.b16 %v705
    %v992 = vunpack.c.h.b16 %v705
    %v993 = vunpack.c.l.b16 %v706
    %v994 = vunpack.c.h.b16 %v706
    %v995 = vunpack.c.l.b16 %v707
    %v996 = vunpack.c.h.b16 %v707
    %v997 = vunpack.c.l.b16 %v708
    %v998 = vunpack.c.h.b16 %v708
    %v999 = vunpack.c.l.b16 %v709
    %v1000 = vunpack.c.h.b16 %v709
    %v1001 = vunpack.c.l.b16 %v710
    %v1002 = vunpack.c.h.b16 %v710
    %v1003 = vunpack.c.l.b16 %v711
    %v1004 = vunpack.c.h.b16 %v711
    %v1005 = vunpack.c.l.b16 %v712
    %v1006 = vunpack.c.h.b16 %v712
    %v1007 = vunpack.c.l.b16 %v713
    %v1008 = vunpack.c.h.b16 %v713
    %v1009 = vunpack.c.l.b16 %v714
    %v1010 = vunpack.c.h.b16 %v714
    %v1011 = vunpack.c.l.b16 %v715
    %v1012 = vunpack.c.h.b16 %v715
    %v1013 = vunpack.c.l.b16 %v716
    %v1014 = vunpack.c.h.b16 %v716
    %v1015 = vunpack.c.l.b16 %v717
    %v1016 = vunpack.c.h.b16 %v717
    %v1017 = vunpack.c.l.b16 %v718
    %v1018 = vunpack.c.h.b16 %v718
    %v1019 = vunpack.c.l.b16 %v719
    %v1020 = vunpack.c.h.b16 %v719
    %v1021 = vunpack.c.l.b16 %v720
    %v1022 = vunpack.c.h.b16 %v720
    %v1023 = vunpack.c.l.b16 %v721
    %v1024 = vunpack.c.h.b16 %v721
    %v1025 = vunpack.c.l.b16 %v722
    %v1026 = vunpack.c.h.b16 %v722
    %v1027 = vunpack.c.l.b16 %v723
    %v1028 = vunpack.c.h.b16 %v723
    %v1029 = vunpack.c.l.b16 %v724
    %v1030 = vunpack.c.h.b16 %v724
    %v1031 = vunpack.c.l.b16 %v725
    %v1032 = vunpack.c.h.b16 %v725
    %v1033 = vunpack.c.l.b16 %v726
    %v1034 = vunpack.c.h.b16 %v726
    %v1035 = vunpack.c.l.b16 %v727
    %v1036 = vunpack.c.h.b16 %v727
    %v1037 = vunpack.c.l.b16 %v728
    %v1038 = vunpack.c.h.b16 %v728
    %v1039 = vunpack.c.l.b16 %v729
    %v1040 = vunpack.c.h.b16 %v729
    %v1041 = vunpack.c.l.b16 %v730
    %v1042 = vunpack.c.h.b16 %v730
    %v1043 = vunpack.c.l.b16 %v731
    %v1044 = vunpack.c.h.b16 %v731
    %v1045 = vunpack.c.l.b16 %v732
    %v1046 = vunpack.c.h.b16 %v732
    %v1047 = vunpack.c.l.b16 %v733
    %v1048 = vunpack.c.h.b16 %v733
    %v1049 = vunpack.c.l.b16 %v734
    %v1050 = vunpack.c.h.b16 %v734
    %v1051 = vunpack.c.l.b16 %v735
    %v1052 = vunpack.c.h.b16 %v735
    %v1053 = vunpack.c.l.b16 %v736
    %v1054 = vunpack.c.h.b16 %v736
    %v1055 = vunpack.c.l.b16 %v737
    %v1056 = vunpack.c.h.b16 %v737
    %v1057 = vunpack.c.l.b16 %v738
    %v1058 = vunpack.c.h.b16 %v738
    %v1059 = vunpack.c.l.b16 %v739
    %v1060 = vunpack.c.h.b16 %v739
    %v1061 = vunpack.c.l.b16 %v740
    %v1062 = vunpack.c.h.b16 %v740
    %v1063 = vunpack.c.l.b16 %v741
    %v1064 = vunpack.c.h.b16 %v741
    %v1065 = vunpack.c.l.b16 %v742
    %v1066 = vunpack.c.h.b16 %v742
    %v1067 = vunpack.c.l.b16 %v743
    %v1068 = vunpack.c.h.b16 %v743
    %v1069 = vunpack.c.l.b16 %v744
    %v1070 = vunpack.c.h.b16 %v744
    %v1071 = vunpack.c.l.b16 %v745
    %v1072 = vunpack.c.h.b16 %v745
    %v1073 = vunpack.c.l.b16 %v746
    %v1074 = vunpack.c.h.b16 %v746
    %v1075 = vunpack.c.l.b16 %v747
    %v1076 = vunpack.c.h.b16 %v747
    %v1077 = vunpack.c.l.b16 %v748
    %v1078 = vunpack.c.h.b16 %v748
    %v1079 = vunpack.c.l.b16 %v749
    %v1080 = vunpack.c.h.b16 %v749
    %v1081 = vunpack.c.l.b16 %v750
    %v1082 = vunpack.c.h.b16 %v750
    %v1083 = vunpack.c.l.b16 %v751
    %v1084 = vunpack.c.h.b16 %v751
    %v1085 = vunpack.c.l.b16 %v752
    %v1086 = vunpack.c.h.b16 %v752
    %v1087 = vunpack.c.l.b16 %v753
    %v1088 = vunpack.c.h.b16 %v753
    %v1089 = vunpack.c.l.b16 %v754
    %v1090 = vunpack.c.h.b16 %v754
    %v1091 = vunpack.c.l.b16 %v755
    %v1092 = vunpack.c.h.b16 %v755
    %v1093 = vunpack.c.l.b16 %v756
    %v1094 = vunpack.c.h.b16 %v756
    %v1095 = vunpack.c.l.b16 %v757
    %v1096 = vunpack.c.h.b16 %v757
    %v1097 = vunpack.c.l.b16 %v758
    %v1098 = vunpack.c.h.b16 %v758
    %v1099 = vunpack.c.l.b16 %v759
    %v1100 = vunpack.c.h.b16 %v759
    %v1101 = vunpack.c.l.b16 %v760
    %v1102 = vunpack.c.h.b16 %v760
    %v1103 = vunpack.c.l.b16 %v761
    %v1104 = vunpack.c.h.b16 %v761
    %v1105 = vunpack.c.l.b16 %v762
    %v1106 = vunpack.c.h.b16 %v762
    %v1107 = vunpack.c.l.b16 %v763
    %v1108 = vunpack.c.h.b16 %v763
    %v1109 = vunpack.c.l.b16 %v764
    %v1110 = vunpack.c.h.b16 %v764
    %v1111 = vunpack.c.l.b16 %v765
    %v1112 = vunpack.c.h.b16 %v765
    %v1113 = vunpack.c.l.b16 %v766
    %v1114 = vunpack.c.h.b16 %v766
    %v1115 = vunpack.c.l.b16 %v767
    %v1116 = vunpack.c.h.b16 %v767
    %v1117 = vunpack.c.l.b16 %v768
    %v1118 = vunpack.c.h.b16 %v768
    %v1119 = vunpack.c.l.b16 %v769
    %v1120 = vunpack.c.h.b16 %v769
    %v1121 = vunpack.c.l.b16 %v770
    %v1122 = vunpack.c.h.b16 %v770
    %v1123 = vunpack.c.l.b16 %v771
    %v1124 = vunpack.c.h.b16 %v771
    %v1125 = vunpack.c.l.b16 %v772
    %v1126 = vunpack.c.h.b16 %v772
    %v1127 = vunpack.c.l.b16 %v773
    %v1128 = vunpack.c.h.b16 %v773
    %v1129 = vunpack.c.l.b16 %v774
    %v1130 = vunpack.c.h.b16 %v774
    %v1131 = vunpack.c.l.b16 %v775
    %v1132 = vunpack.c.h.b16 %v775
    %v1133 = vunpack.c.l.b16 %v776
    %v1134 = vunpack.c.h.b16 %v776
    %v1135 = vunpack.c.l.b16 %v777
    %v1136 = vunpack.c.h.b16 %v777
    %v1137 = vunpack.c.l.b16 %v778
    %v1138 = vunpack.c.h.b16 %v778
    %v1139 = vunpack.c.l.b16 %v779
    %v1140 = vunpack.c.h.b16 %v779
    %v1141 = vunpack.c.l.b16 %v780
    %v1142 = vunpack.c.h.b16 %v780
    %v1143 = vunpack.c.l.b16 %v781
    %v1144 = vunpack.c.h.b16 %v781
    %v1145 = vunpack.c.l.b16 %v782
    %v1146 = vunpack.c.h.b16 %v782
    %v1147 = vunpack.c.l.b16 %v783
    %v1148 = vunpack.c.h.b16 %v783
    %v1149 = vunpack.c.l.b16 %v784
    %v1150 = vunpack.c.h.b16 %v784
    %v1151 = vunpack.c.l.b16 %v785
    %v1152 = vunpack.c.h.b16 %v785
    %v1153 = vunpack.c.l.b16 %v786
    %v1154 = vunpack.c.h.b16 %v786
    %v1155 = vunpack.c.l.b16 %v787
    %v1156 = vunpack.c.h.b16 %v787
    %v1157 = vunpack.c.l.b16 %v788
    %v1158 = vunpack.c.h.b16 %v788
    %v1159 = vunpack.c.l.b16 %v789
    %v1160 = vunpack.c.h.b16 %v789
    %v1161 = vunpack.c.l.b16 %v790
    %v1162 = vunpack.c.h.b16 %v790
    %v1163 = vunpack.c.l.b16 %v791
    %v1164 = vunpack.c.h.b16 %v791
    %v1165 = vunpack.c.l.b16 %v792
    %v1166 = vunpack.c.h.b16 %v792
    %v1167 = vunpack.c.l.b16 %v793
    %v1168 = vunpack.c.h.b16 %v793
    %v1169 = vunpack.c.l.b16 %v794
    %v1170 = vunpack.c.h.b16 %v794
    %v1171 = vunpack.c.l.b16 %v795
    %v1172 = vunpack.c.h.b16 %v795
    %v1173 = vunpack.c.l.b16 %v796
    %v1174 = vunpack.c.h.b16 %v796
    %v1175 = vunpack.c.l.b16 %v797
    %v1176 = vunpack.c.h.b16 %v797
    %v1177 = vunpack.c.l.b16 %v798
    %v1178 = vunpack.c.h.b16 %v798
    %v1179 = vunpack.c.l.b16 %v799
    %v1180 = vunpack.c.h.b16 %v799
    %v1181 = vunpack.c.l.b16 %v800
    %v1182 = vunpack.c.h.b16 %v800
    %v1183 = vunpack.c.l.b16 %v801
    %v1184 = vunpack.c.h.b16 %v801
    %v1185 = vunpack.c.l.b16 %v802
    %v1186 = vunpack.c.h.b16 %v802
    %v1187 = vunpack.c.l.b16 %v803
    %v1188 = vunpack.c.h.b16 %v803
    %v1189 = vunpack.c.l.b16 %v804
    %v1190 = vunpack.c.h.b16 %v804
    %v1191 = vunpack.c.l.b16 %v805
    %v1192 = vunpack.c.h.b16 %v805
    %v1193 = vunpack.c.l.b16 %v806
    %v1194 = vunpack.c.h.b16 %v806
    %v1195 = vunpack.c.l.b16 %v807
    %v1196 = vunpack.c.h.b16 %v807
    %v1197 = vunpack.c.l.b16 %v808
    %v1198 = vunpack.c.h.b16 %v808
    %v1199 = vpack.c.b16 %v945, %v943
    %v1200 = vpack.c.b16 %v946, %v944
    %v1201 = vpack.c.b16 %v949, %v947
    %v1202 = vpack.c.b16 %v950, %v948
    %v1203 = vpack.c.b16 %v953, %v951
    %v1204 = vpack.c.b16 %v954, %v952
    %v1205 = vpack.c.b16 %v957, %v955
    %v1206 = vpack.c.b16 %v958, %v956
    %v1207 = vpack.c.b16 %v961, %v959
    %v1208 = vpack.c.b16 %v962, %v960
    %v1209 = vpack.c.b16 %v965, %v963
    %v1210 = vpack.c.b16 %v966, %v964
    %v1211 = vpack.c.b16 %v969, %v967
    %v1212 = vpack.c.b16 %v970, %v968
    %v1213 = vpack.c.b16 %v973, %v971
    %v1214 = vpack.c.b16 %v974, %v972
    %v1215 = vpack.c.b16 %v977, %v975
    %v1216 = vpack.c.b16 %v978, %v976
    %v1217 = vpack.c.b16 %v981, %v979
    %v1218 = vpack.c.b16 %v982, %v980
    %v1219 = vpack.c.b16 %v985, %v983
    %v1220 = vpack.c.b16 %v986, %v984
    %v1221 = vpack.c.b16 %v989, %v987
    %v1222 = vpack.c.b16 %v990, %v988
    %v1223 = vpack.c.b16 %v993, %v991
    %v1224 = vpack.c.b16 %v994, %v992
    %v1225 = vpack.c.b16 %v997, %v995
    %v1226 = vpack.c.b16 %v998, %v996
    %v1227 = vpack.c.b16 %v1001, %v999
    %v1228 = vpack.c.b16 %v1002, %v1000
    %v1229 = vpack.c.b16 %v1005, %v1003
    %v1230 = vpack.c.b16 %v1006, %v1004
    %v1231 = vpack.c.b16 %v1009, %v1007
    %v1232 = vpack.c.b16 %v1010, %v1008
    %v1233 = vpack.c.b16 %v1013, %v1011
    %v1234 = vpack.c.b16 %v1014, %v1012
    %v1235 = vpack.c.b16 %v1017, %v1015
    %v1236 = vpack.c.b16 %v1018, %v1016
    %v1237 = vpack.c.b16 %v1021, %v1019
    %v1238 = vpack.c.b16 %v1022, %v1020
    %v1239 = vpack.c.b16 %v1025, %v1023
    %v1240 = vpack.c.b16 %v1026, %v1024
    %v1241 = vpack.c.b16 %v1029, %v1027
    %v1242 = vpack.c.b16 %v1030, %v1028
    %v1243 = vpack.c.b16 %v1033, %v1031
    %v1244 = vpack.c.b16 %v1034, %v1032
    %v1245 = vpack.c.b16 %v1037, %v1035
    %v1246 = vpack.c.b16 %v1038, %v1036
    %v1247 = vpack.c.b16 %v1041, %v1039
    %v1248 = vpack.c.b16 %v1042, %v1040
    %v1249 = vpack.c.b16 %v1045, %v1043
    %v1250 = vpack.c.b16 %v1046, %v1044
    %v1251 = vpack.c.b16 %v1049, %v1047
    %v1252 = vpack.c.b16 %v1050, %v1048
    %v1253 = vpack.c.b16 %v1053, %v1051
    %v1254 = vpack.c.b16 %v1054, %v1052
    %v1255 = vpack.c.b16 %v1057, %v1055
    %v1256 = vpack.c.b16 %v1058, %v1056
    %v1257 = vpack.c.b16 %v1061, %v1059
    %v1258 = vpack.c.b16 %v1062, %v1060
    %v1259 = vpack.c.b16 %v1065, %v1063
    %v1260 = vpack.c.b16 %v1066, %v1064
    %v1261 = vpack.c.b16 %v1069, %v1067
    %v1262 = vpack.c.b16 %v1070, %v1068
    %v1263 = vpack.c.b16 %v1073, %v1071
    %v1264 = vpack.c.b16 %v1074, %v1072
    %v1265 = vpack.c.b16 %v1077, %v1075
    %v1266 = vpack.c.b16 %v1078, %v1076
    %v1267 = vpack.c.b16 %v1081, %v1079
    %v1268 = vpack.c.b16 %v1082, %v1080
    %v1269 = vpack.c.b16 %v1085, %v1083
    %v1270 = vpack.c.b16 %v1086, %v1084
    %v1271 = vpack.c.b16 %v1089, %v1087
    %v1272 = vpack.c.b16 %v1090, %v1088
    %v1273 = vpack.c.b16 %v1093, %v1091
    %v1274 = vpack.c.b16 %v1094, %v1092
    %v1275 = vpack.c.b16 %v1097, %v1095
    %v1276 = vpack.c.b16 %v1098, %v1096
    %v1277 = vpack.c.b16 %v1101, %v1099
    %v1278 = vpack.c.b16 %v1102, %v1100
    %v1279 = vpack.c.b16 %v1105, %v1103
    %v1280 = vpack.c.b16 %v1106, %v1104
    %v1281 = vpack.c.b16 %v1109, %v1107
    %v1282 = vpack.c.b16 %v1110, %v1108
    %v1283 = vpack.c.b16 %v1113, %v1111
    %v1284 = vpack.c.b16 %v1114, %v1112
    %v1285 = vpack.c.b16 %v1117, %v1115
    %v1286 = vpack.c.b16 %v1118, %v1116
    %v1287 = vpack.c.b16 %v1121, %v1119
    %v1288 = vpack.c.b16 %v1122, %v1120
    %v1289 = vpack.c.b16 %v1125, %v1123
    %v1290 = vpack.c.b16 %v1126, %v1124
    %v1291 = vpack.c.b16 %v1129, %v1127
    %v1292 = vpack.c.b16 %v1130, %v1128
    %v1293 = vpack.c.b16 %v1133, %v1131
    %v1294 = vpack.c.b16 %v1134, %v1132
    %v1295 = vpack.c.b16 %v1137, %v1135
    %v1296 = vpack.c.b16 %v1138, %v1136
    %v1297 = vpack.c.b16 %v1141, %v1139
    %v1298 = vpack.c.b16 %v1142, %v1140
    %v1299 = vpack.c.b16 %v1145, %v1143
    %v1300 = vpack.c.b16 %v1146, %v1144
    %v1301 = vpack.c.b16 %v1149, %v1147
    %v1302 = vpack.c.b16 %v1150, %v1148
    %v1303 = vpack.c.b16 %v1153, %v1151
    %v1304 = vpack.c.b16 %v1154, %v1152
    %v1305 = vpack.c.b16 %v1157, %v1155
    %v1306 = vpack.c.b16 %v1158, %v1156
    %v1307 = vpack.c.b16 %v1161, %v1159
    %v1308 = vpack.c.b16 %v1162, %v1160
    %v1309 = vpack.c.b16 %v1165, %v1163
    %v1310 = vpack.c.b16 %v1166, %v1164
    %v1311 = vpack.c.b16 %v1169, %v1167
    %v1312 = vpack.c.b16 %v1170, %v1168
    %v1313 = vpack.c.b16 %v1173, %v1171
    %v1314 = vpack.c.b16 %v1174, %v1172
    %v1315 = vpack.c.b16 %v1177, %v1175
    %v1316 = vpack.c.b16 %v1178, %v1176
    %v1317 = vpack.c.b16 %v1181, %v1179
    %v1318 = vpack.c.b16 %v1182, %v1180
    %v1319 = vpack.c.b16 %v1185, %v1183
    %v1320 = vpack.c.b16 %v1186, %v1184
    %v1321 = vpack.c.b16 %v1189, %v1187
    %v1322 = vpack.c.b16 %v1190, %v1188
    %v1323 = vpack.c.b16 %v1193, %v1191
    %v1324 = vpack.c.b16 %v1194, %v1192
    %v1325 = vpack.c.b16 %v1197, %v1195
    %v1326 = vpack.c.b16 %v1198, %v1196
    %1455 = vmatpush.bf16.msra.mxu0 %v1213
    %1456 = vmatpush.bf16.msra.mxu0 %v1211
    %1457 = vmatpush.bf16.msra.mxu0 %v1209
    %1458 = vmatpush.bf16.msra.mxu0 %v1207
    %1459 = vmatpush.bf16.msra.mxu0 %v1205
    %1460 = vmatpush.bf16.msra.mxu0 %v1203
    %1461 = vmatpush.bf16.msra.mxu0 %v1201
    %1462 = vmatpush.bf16.msra.mxu0 %v1199
    %1463 = vmatmul.bf16.gmra.mxu0 %v673
    %v1464 = vpop.f32.mrf.mxu0
    %v1465 = vadd.f32 %v811, %v1464
    %v1466 = vpop.f32.mrf.mxu0
    %1467 = vdwg.mxu0
    %1468 = vmatpush.bf16.msra.mxu0 %v1229
    %1469 = vmatpush.bf16.msra.mxu0 %v1227
    %1470 = vmatpush.bf16.msra.mxu0 %v1225
    %1471 = vmatpush.bf16.msra.mxu0 %v1223
    %1472 = vmatpush.bf16.msra.mxu0 %v1221
    %1473 = vmatpush.bf16.msra.mxu0 %v1219
    %1474 = vmatpush.bf16.msra.mxu0 %v1217
    %1475 = vmatpush.bf16.msra.mxu0 %v1215
    %1476 = vmatmul.bf16.gmra.mxu0 %v674
    %v1477 = vpop.f32.mrf.mxu0
    %v1478 = vadd.f32 %v1465, %v1477
    %v1479 = vpop.f32.mrf.mxu0
    %1480 = vdwg.mxu0
    %1481 = vmatpush.bf16.msra.mxu0 %v1245
    %1482 = vmatpush.bf16.msra.mxu0 %v1243
    %1483 = vmatpush.bf16.msra.mxu0 %v1241
    %1484 = vmatpush.bf16.msra.mxu0 %v1239
    %1485 = vmatpush.bf16.msra.mxu0 %v1237
    %1486 = vmatpush.bf16.msra.mxu0 %v1235
    %1487 = vmatpush.bf16.msra.mxu0 %v1233
    %1488 = vmatpush.bf16.msra.mxu0 %v1231
    %1489 = vmatmul.bf16.gmra.mxu0 %v675
    %v1490 = vpop.f32.mrf.mxu0
    %v1491 = vadd.f32 %v1478, %v1490
    %v1492 = vpop.f32.mrf.mxu0
    %1493 = vdwg.mxu0
    %1494 = vmatpush.bf16.msra.mxu0 %v1261
    %1495 = vmatpush.bf16.msra.mxu0 %v1259
    %1496 = vmatpush.bf16.msra.mxu0 %v1257
    %1497 = vmatpush.bf16.msra.mxu0 %v1255
    %1498 = vmatpush.bf16.msra.mxu0 %v1253
    %1499 = vmatpush.bf16.msra.mxu0 %v1251
    %1500 = vmatpush.bf16.msra.mxu0 %v1249
    %1501 = vmatpush.bf16.msra.mxu0 %v1247
    %1502 = vmatmul.bf16.gmra.mxu0 %v676
    %v1503 = vpop.f32.mrf.mxu0
    %v1504 = vadd.f32 %v1491, %v1503
    %v1505 = vpop.f32.mrf.mxu0
    %1506 = vdwg.mxu0
    %1507 = vmatpush.bf16.msra.mxu0 %v1277
    %1508 = vmatpush.bf16.msra.mxu0 %v1275
    %1509 = vmatpush.bf16.msra.mxu0 %v1273
    %1510 = vmatpush.bf16.msra.mxu0 %v1271
    %1511 = vmatpush.bf16.msra.mxu0 %v1269
    %1512 = vmatpush.bf16.msra.mxu0 %v1267
    %1513 = vmatpush.bf16.msra.mxu0 %v1265
    %1514 = vmatpush.bf16.msra.mxu0 %v1263
    %1515 = vmatmul.bf16.gmra.mxu0 %v677
    %v1516 = vpop.f32.mrf.mxu0
    %v1517 = vadd.f32 %v1504, %v1516
    %v1518 = vpop.f32.mrf.mxu0
    %1519 = vdwg.mxu0
    %1520 = vmatpush.bf16.msra.mxu0 %v1293
    %1521 = vmatpush.bf16.msra.mxu0 %v1291
    %1522 = vmatpush.bf16.msra.mxu0 %v1289
    %1523 = vmatpush.bf16.msra.mxu0 %v1287
    %1524 = vmatpush.bf16.msra.mxu0 %v1285
    %1525 = vmatpush.bf16.msra.mxu0 %v1283
    %1526 = vmatpush.bf16.msra.mxu0 %v1281
    %1527 = vmatpush.bf16.msra.mxu0 %v1279
    %1528 = vmatmul.bf16.gmra.mxu0 %v678
    %v1529 = vpop.f32.mrf.mxu0
    %v1530 = vadd.f32 %v1517, %v1529
    %v1531 = vpop.f32.mrf.mxu0
    %1532 = vdwg.mxu0
    %1533 = vmatpush.bf16.msra.mxu0 %v1309
    %1534 = vmatpush.bf16.msra.mxu0 %v1307
    %1535 = vmatpush.bf16.msra.mxu0 %v1305
    %1536 = vmatpush.bf16.msra.mxu0 %v1303
    %1537 = vmatpush.bf16.msra.mxu0 %v1301
    %1538 = vmatpush.bf16.msra.mxu0 %v1299
    %1539 = vmatpush.bf16.msra.mxu0 %v1297
    %1540 = vmatpush.bf16.msra.mxu0 %v1295
    %1541 = vmatmul.bf16.gmra.mxu0 %v679
    %v1542 = vpop.f32.mrf.mxu0
    %v1543 = vadd.f32 %v1530, %v1542
    %v1544 = vpop.f32.mrf.mxu0
    %1545 = vdwg.mxu0
    %1546 = vmatpush.bf16.msra.mxu0 %v1325
    %1547 = vmatpush.bf16.msra.mxu0 %v1323
    %1548 = vmatpush.bf16.msra.mxu0 %v1321
    %1549 = vmatpush.bf16.msra.mxu0 %v1319
    %1550 = vmatpush.bf16.msra.mxu0 %v1317
    %1551 = vmatpush.bf16.msra.mxu0 %v1315
    %1552 = vmatpush.bf16.msra.mxu0 %v1313
    %1553 = vmatpush.bf16.msra.mxu0 %v1311
    %1554 = vmatmul.bf16.gmra.mxu0 %v680
    %v1555 = vpop.f32.mrf.mxu0
    %v1556 = vadd.f32 %v1543, %v1555
    %v1557 = vpop.f32.mrf.mxu0
    %1558 = vdwg.mxu0
    %1559 = vmatpush.bf16.msra.mxu0 %v1214
    %1560 = vmatpush.bf16.msra.mxu0 %v1212
    %1561 = vmatpush.bf16.msra.mxu0 %v1210
    %1562 = vmatpush.bf16.msra.mxu0 %v1208
    %1563 = vmatpush.bf16.msra.mxu0 %v1206
    %1564 = vmatpush.bf16.msra.mxu0 %v1204
    %1565 = vmatpush.bf16.msra.mxu0 %v1202
    %1566 = vmatpush.bf16.msra.mxu0 %v1200
    %1567 = vmatmul.bf16.gmra.mxu0 %v673
    %v1568 = vpop.f32.mrf.mxu0
    %v1569 = vadd.f32 %v812, %v1568
    %v1570 = vpop.f32.mrf.mxu0
    %1571 = vdwg.mxu0
    %1572 = vmatpush.bf16.msra.mxu0 %v1230
    %1573 = vmatpush.bf16.msra.mxu0 %v1228
    %1574 = vmatpush.bf16.msra.mxu0 %v1226
    %1575 = vmatpush.bf16.msra.mxu0 %v1224
    %1576 = vmatpush.bf16.msra.mxu0 %v1222
    %1577 = vmatpush.bf16.msra.mxu0 %v1220
    %1578 = vmatpush.bf16.msra.mxu0 %v1218
    %1579 = vmatpush.bf16.msra.mxu0 %v1216
    %1580 = vmatmul.bf16.gmra.mxu0 %v674
    %v1581 = vpop.f32.mrf.mxu0
    %v1582 = vadd.f32 %v1569, %v1581
    %v1583 = vpop.f32.mrf.mxu0
    %1584 = vdwg.mxu0
    %1585 = vmatpush.bf16.msra.mxu0 %v1246
    %1586 = vmatpush.bf16.msra.mxu0 %v1244
    %1587 = vmatpush.bf16.msra.mxu0 %v1242
    %1588 = vmatpush.bf16.msra.mxu0 %v1240
    %1589 = vmatpush.bf16.msra.mxu0 %v1238
    %1590 = vmatpush.bf16.msra.mxu0 %v1236
    %1591 = vmatpush.bf16.msra.mxu0 %v1234
    %1592 = vmatpush.bf16.msra.mxu0 %v1232
    %1593 = vmatmul.bf16.gmra.mxu0 %v675
    %v1594 = vpop.f32.mrf.mxu0
    %v1595 = vadd.f32 %v1582, %v1594
    %v1596 = vpop.f32.mrf.mxu0
    %1597 = vdwg.mxu0
    %1598 = vmatpush.bf16.msra.mxu0 %v1262
    %1599 = vmatpush.bf16.msra.mxu0 %v1260
    %1600 = vmatpush.bf16.msra.mxu0 %v1258
    %1601 = vmatpush.bf16.msra.mxu0 %v1256
    %1602 = vmatpush.bf16.msra.mxu0 %v1254
    %1603 = vmatpush.bf16.msra.mxu0 %v1252
    %1604 = vmatpush.bf16.msra.mxu0 %v1250
    %1605 = vmatpush.bf16.msra.mxu0 %v1248
    %1606 = vmatmul.bf16.gmra.mxu0 %v676
    %v1607 = vpop.f32.mrf.mxu0
    %v1608 = vadd.f32 %v1595, %v1607
    %v1609 = vpop.f32.mrf.mxu0
    %1610 = vdwg.mxu0
    %1611 = vmatpush.bf16.msra.mxu0 %v1278
    %1612 = vmatpush.bf16.msra.mxu0 %v1276
    %1613 = vmatpush.bf16.msra.mxu0 %v1274
    %1614 = vmatpush.bf16.msra.mxu0 %v1272
    %1615 = vmatpush.bf16.msra.mxu0 %v1270
    %1616 = vmatpush.bf16.msra.mxu0 %v1268
    %1617 = vmatpush.bf16.msra.mxu0 %v1266
    %1618 = vmatpush.bf16.msra.mxu0 %v1264
    %1619 = vmatmul.bf16.gmra.mxu0 %v677
    %v1620 = vpop.f32.mrf.mxu0
    %v1621 = vadd.f32 %v1608, %v1620
    %v1622 = vpop.f32.mrf.mxu0
    %1623 = vdwg.mxu0
    %1624 = vmatpush.bf16.msra.mxu0 %v1294
    %1625 = vmatpush.bf16.msra.mxu0 %v1292
    %1626 = vmatpush.bf16.msra.mxu0 %v1290
    %1627 = vmatpush.bf16.msra.mxu0 %v1288
    %1628 = vmatpush.bf16.msra.mxu0 %v1286
    %1629 = vmatpush.bf16.msra.mxu0 %v1284
    %1630 = vmatpush.bf16.msra.mxu0 %v1282
    %1631 = vmatpush.bf16.msra.mxu0 %v1280
    %1632 = vmatmul.bf16.gmra.mxu0 %v678
    %v1633 = vpop.f32.mrf.mxu0
    %v1634 = vadd.f32 %v1621, %v1633
    %v1635 = vpop.f32.mrf.mxu0
    %1636 = vdwg.mxu0
    %1637 = vmatpush.bf16.msra.mxu0 %v1310
    %1638 = vmatpush.bf16.msra.mxu0 %v1308
    %1639 = vmatpush.bf16.msra.mxu0 %v1306
    %1640 = vmatpush.bf16.msra.mxu0 %v1304
    %1641 = vmatpush.bf16.msra.mxu0 %v1302
    %1642 = vmatpush.bf16.msra.mxu0 %v1300
    %1643 = vmatpush.bf16.msra.mxu0 %v1298
    %1644 = vmatpush.bf16.msra.mxu0 %v1296
    %1645 = vmatmul.bf16.gmra.mxu0 %v679
    %v1646 = vpop.f32.mrf.mxu0
    %v1647 = vadd.f32 %v1634, %v1646
    %v1648 = vpop.f32.mrf.mxu0
    %1649 = vdwg.mxu0
    %1650 = vmatpush.bf16.msra.mxu0 %v1326
    %1651 = vmatpush.bf16.msra.mxu0 %v1324
    %1652 = vmatpush.bf16.msra.mxu0 %v1322
    %1653 = vmatpush.bf16.msra.mxu0 %v1320
    %1654 = vmatpush.bf16.msra.mxu0 %v1318
    %1655 = vmatpush.bf16.msra.mxu0 %v1316
    %1656 = vmatpush.bf16.msra.mxu0 %v1314
    %1657 = vmatpush.bf16.msra.mxu0 %v1312
    %1658 = vmatmul.bf16.gmra.mxu0 %v680
    %v1659 = vpop.f32.mrf.mxu0
    %v1660 = vadd.f32 %v1647, %v1659
    %v1661 = vpop.f32.mrf.mxu0
    %1662 = vdwg.mxu0
    %vm1663 = vcmp.ge.f32.partialorder %v1556, 0.0
    %vm1664 = vcmp.ge.f32.partialorder %v1660, 0.0
    %v1665 = vmul.f32 %v1556, 0.01
    %v1666 = vmul.f32 %v1660, 0.01
    %v1667 = vsel %vm1663, %v1556, %v1665
    %v1668 = vsel %vm1664, %v1660, %v1666
    %v1669 = vld [vmem:[%s8] sm:$0x3]
    %v1671 = vperm.slane %v1669, 0
    %v1672 = vperm.slane %v1669, 1
    %v1675 = vmul.f32 %v1667, %v1671
    %v1676 = vmul.f32 %v1668, %v1672
    %vm1677 = vcmask 1041408
    %v1678 = vsel %vm1677, %v1675, 0.0
    %v1679 = vsel %vm1677, %v1676, 0.0
    %v1680 = vadd.f32 %v1678, %v1679
    %1681 = vadd.xlane.f32.xlu0 %v1680
    %v1682 = vpop.xlane.xlu0 %1681
    %v1683 = vld [vmem:[#allocation2] sm:$0x1]
    %v1685 = vperm.slane %v1683, 0
    %v1687 = vadd.f32 %v1682, %v1685
    %v1688 = vmul.f32 %v1687, 0.5
    %v1689 = vtanh.pop %v1688
    %v1690 = vadd.f32 %v1689, 1.0
    %v1691 = vmul.f32 %v1690, 2.0
    %vm1692 = vcmask 1024
    %1693 = vst.msk [vmem:[%s10] sm:$0x3] %vm1692, %v1691
    // Predicated region
    $region50: #{tpu_custom_call.1} parent=1 // pred_check
      _
    $region51: #{tpu_custom_call.1} parent=1 // pred_check_branch
      %1695 = sbr.rel (0) target = $region53
    $region52: #{tpu_custom_call.1} parent=1 // pred_region
      _
    $region53: #{tpu_custom_call.1} parent=1 // pred_fallthru
      _
    // Predicated region
    $region54: #{tpu_custom_call.1} parent=1 // pred_check
      _
    $region55: #{tpu_custom_call.1} parent=1 // pred_check_branch
      %1697 = sbr.rel (0) target = $region57
    $region56: #{tpu_custom_call.1} parent=1 // pred_region
      _
    $region57: #{tpu_custom_call.1} parent=1 // pred_fallthru
      _
    %1698 = vsyncpa [#allocation4], 1
    %1699 = vsyncpa [#allocation6], 1

</llo_original>
